<compile_context>
chip_gen: v7x
topology: tpu7x:2x2x1
jax: 0.10.0
libtpu: 0.0.40
codegen_flags: <defaults>
</compile_context>

<pallas_src>
import jax
import jax.numpy as jnp
from jax.experimental import pallas as pl
from jax.experimental.pallas import tpu as pltpu


def _densenet_kernel(x_ref, w_ref, scale_ref, bias_ref, out_ref,
                     act_ref, sum_ref):
    """One (batch n, layer l) grid step of the fused dense block.

    x_ref    : (H, W, C)          input image (only read at l == 0)
    w_ref    : (9*C, C)   bf16    layer-l conv taps, rows ordered (kh, kw, cin)
    scale_ref: (1, C)     f32     folded BN scale  gamma / sqrt(var + eps)
    bias_ref : (1, C)     f32     folded conv-bias + BN shift
    out_ref  : (H, W, C)          final activation (only written at last l)
    act_ref  : (H+2, W+2, C) f32  VMEM scratch: zero-padded outs[l] (persists)
    sum_ref  : (H, W, C)     f32  VMEM scratch: running sum_{j<l} outs[j]
    """
    l = pl.program_id(1)
    H, W, C = sum_ref.shape

    # Layer 0: zero the padded scratch once (border stays zero for all
    # layers), place the input image in its interior, clear the skip-sum.
    @pl.when(l == 0)
    def _init():
        act_ref[...] = jnp.zeros_like(act_ref)
        act_ref[pl.ds(1, H), pl.ds(1, W), :] = x_ref[...].astype(jnp.float32)
        sum_ref[...] = jnp.zeros_like(sum_ref)

    # 3x3 conv as ONE (H*W, 9C) x (9C, C) MXU matmul: im2col the 9 shifted
    # windows straight from ref slices of the padded VMEM scratch (bf16).
    pieces = []
    for kh in range(3):
        for kw in range(3):
            pieces.append(
                act_ref[pl.ds(kh, H), pl.ds(kw, W), :]
                .reshape(H * W, C).astype(jnp.bfloat16))
    patches = jnp.concatenate(pieces, axis=-1)                 # (H*W, 9C) bf16
    conv = jnp.dot(patches, w_ref[...],
                   preferred_element_type=jnp.float32)         # (H*W, C) f32

    cur = act_ref[pl.ds(1, H), pl.ds(1, W), :]                 # outs[l] (f32)
    s_prev = sum_ref[...]                                      # sum_{j<l} outs[j]

    temp = conv.reshape(H, W, C) + s_prev                      # conv + skip-sum
    y = temp * scale_ref[0] + bias_ref[0]                      # bias + BN affine
    y = jnp.maximum(y, 0.0)                                    # ReLU

    # Carry state to the next layer entirely in VMEM (no HBM round-trip).
    sum_ref[...] = s_prev + cur
    act_ref[pl.ds(1, H), pl.ds(1, W), :] = y

    # Only the final layer's activation goes back to HBM.
    @pl.when(l == pl.num_programs(1) - 1)
    def _store():
        out_ref[...] = y.astype(out_ref.dtype)


def single_level_densenet(x, conv_ws, conv_bs, bn_gammas, bn_betas,
                          bn_means, bn_vars, *, eps=1e-5):
    """Pallas equivalent of Single_level_densenet.forward (NCHW in / out)."""
    # TODO(synk): BatchNorm2d is implemented in inference mode (running
    # statistics folded with the conv bias into a per-channel affine);
    # training-mode batch statistics are not computed.
    N, C, H, W = x.shape
    num_conv = len(conv_ws)
    dt = x.dtype

    # Fold each layer's conv bias + BN into a per-channel affine and stack all
    # layers' parameters so one pallas_call covers the whole dense block.
    w_l, s_l, b_l = [], [], []
    for i in range(num_conv):
        # torch (C_out, C_in, 3, 3) -> (3, 3, C_in, C_out) -> (9*C_in, C_out)
        w_l.append(jnp.transpose(conv_ws[i], (2, 3, 1, 0)).reshape(9 * C, C))
        s = bn_gammas[i] / jnp.sqrt(bn_vars[i] + eps)
        s_l.append(s)
        b_l.append((conv_bs[i] - bn_means[i]) * s + bn_betas[i])
    w_stack = jnp.stack(w_l).astype(jnp.bfloat16)              # (L, 9C, C)
    scale_stack = jnp.stack(s_l).astype(jnp.float32).reshape(num_conv, 1, C)
    bias_stack = jnp.stack(b_l).astype(jnp.float32).reshape(num_conv, 1, C)

    # NCHW -> NHWC: channels on the lane axis for the matmul / affine path.
    x_nhwc = jnp.transpose(x, (0, 2, 3, 1))

    out = pl.pallas_call(
        _densenet_kernel,
        out_shape=jax.ShapeDtypeStruct((N, H, W, C), dt),
        grid=(N, num_conv),
        in_specs=[
            pl.BlockSpec((None, H, W, C), lambda n, l: (n, 0, 0, 0)),
            pl.BlockSpec((None, 9 * C, C), lambda n, l: (l, 0, 0)),
            pl.BlockSpec((None, 1, C), lambda n, l: (l, 0, 0)),
            pl.BlockSpec((None, 1, C), lambda n, l: (l, 0, 0)),
        ],
        out_specs=pl.BlockSpec((None, H, W, C), lambda n, l: (n, 0, 0, 0)),
        scratch_shapes=[
            pltpu.VMEM((H + 2, W + 2, C), jnp.float32),   # padded outs[l]
            pltpu.VMEM((H, W, C), jnp.float32),           # running skip-sum
        ],
        compiler_params=pltpu.CompilerParams(
            dimension_semantics=("parallel", "arbitrary")),
    )(x_nhwc, w_stack, scale_stack, bias_stack)

    return jnp.transpose(out, (0, 3, 1, 2))                    # back to NCHW


def _reference(x, conv_ws, conv_bs, bn_gammas, bn_betas, bn_means, bn_vars,
               eps=1e-5):
    """Pure-JAX reference matching the PyTorch forward (inference BN)."""
    outs = [x]
    for i in range(len(conv_ws)):
        t = jax.lax.conv_general_dilated(
            outs[i], conv_ws[i], window_strides=(1, 1),
            padding=((1, 1), (1, 1)),
            dimension_numbers=("NCHW", "OIHW", "NCHW"),
            precision=jax.lax.Precision.HIGHEST)
        t = t + conv_bs[i][None, :, None, None]
        for j in range(i):
            t = t + outs[j]
        s = bn_gammas[i] / jnp.sqrt(bn_vars[i] + eps)
        t = (t - bn_means[i][None, :, None, None]) * s[None, :, None, None] \
            + bn_betas[i][None, :, None, None]
        outs.append(jnp.maximum(t, 0.0))
    return outs[-1]


if __name__ == "__main__":
    key = jax.random.PRNGKey(0)
    N, C, H, W = 2, 32, 16, 16       # filters=32
    num_conv = 4

    keys = jax.random.split(key, 1 + 6 * num_conv)
    x = jax.random.normal(keys[0], (N, C, H, W), dtype=jnp.float32)

    conv_ws, conv_bs, gammas, betas, means, vars_ = [], [], [], [], [], []
    for i in range(num_conv):
        k = keys[1 + 6 * i: 1 + 6 * (i + 1)]
        conv_ws.append(0.05 * jax.random.normal(k[0], (C, C, 3, 3), jnp.float32))
        conv_bs.append(0.1 * jax.random.normal(k[1], (C,), jnp.float32))
        gammas.append(1.0 + 0.1 * jax.random.normal(k[2], (C,), jnp.float32))
        betas.append(0.1 * jax.random.normal(k[3], (C,), jnp.float32))
        means.append(0.1 * jax.random.normal(k[4], (C,), jnp.float32))
        vars_.append(jax.random.uniform(k[5], (C,), jnp.float32, 0.5, 1.5))

    fwd = jax.jit(single_level_densenet)
    y = fwd(x, conv_ws, conv_bs, gammas, betas, means, vars_)
    jax.block_until_ready(y)

    y_ref = _reference(x, conv_ws, conv_bs, gammas, betas, means, vars_)
    assert y.shape == (N, C, H, W), y.shape
    max_err = float(jnp.max(jnp.abs(y - y_ref)))
    # Tolerance accounts for bf16 MXU operands (f32 accumulation / elementwise)
    # vs. the f32 HIGHEST-precision reference, compounded over 4 dense layers.
    assert max_err < 5e-2, f"mismatch vs reference: max abs err {max_err}"
    print("KERNEL_OK")
</pallas_src>

<mosaic_0001>
module attributes {stable_mosaic.version = 11 : i64} {
  func.func @_densenet_kernel(%arg0: i32, %arg1: i32, %arg2: memref<1x16x16x32xf32, #tpu.memory_space<vmem>>, %arg3: memref<1x288x32xbf16, #tpu.memory_space<vmem>>, %arg4: memref<1x1x32xf32, #tpu.memory_space<vmem>>, %arg5: memref<1x1x32xf32, #tpu.memory_space<vmem>>, %arg6: memref<1x16x16x32xf32, #tpu.memory_space<vmem>>, %arg7: memref<18x18x32xf32, #tpu.memory_space<vmem>>, %arg8: memref<16x16x32xf32, #tpu.memory_space<vmem>>) attributes {dimension_semantics = [#tpu.dimension_semantics<parallel>, #tpu.dimension_semantics<arbitrary>], iteration_bounds = array<i64: 2, 4>, scalar_prefetch = 0 : i64, scratch_operands = 2 : i64, tpu.core_type = #tpu.core_type<tc>, window_params = [{transform_indices = @transform_0, window_bounds = array<i64: 1, 16, 16, 32>}, {transform_indices = @transform_1, window_bounds = array<i64: 1, 288, 32>}, {transform_indices = @transform_2, window_bounds = array<i64: 1, 1, 32>}, {transform_indices = @transform_3, window_bounds = array<i64: 1, 1, 32>}, {transform_indices = @transform_4, window_bounds = array<i64: 1, 16, 16, 32>}]} {
    %c0_i32 = arith.constant 0 : i32
    %0 = arith.cmpi eq, %arg1, %c0_i32 : i32
    %1 = arith.extui %0 : i1 to i32
    %c0_i32_0 = arith.constant 0 : i32
    %2 = arith.cmpi ne, %1, %c0_i32_0 : i32
    scf.if %2 {
      %cst_48 = arith.constant 0.000000e+00 : f32
      %56 = vector.broadcast %cst_48 : f32 to vector<18x18x32xf32>
      %c0_49 = arith.constant 0 : index
      %c0_50 = arith.constant 0 : index
      %c0_51 = arith.constant 0 : index
      %57 = vector.load %arg7[%c0_49, %c0_50, %c0_51] : memref<18x18x32xf32, #tpu.memory_space<vmem>>, vector<18x18x32xf32>
      tpu.vector_store %arg7[%c0_49, %c0_50, %c0_51], %56 {strides = array<i32>} : memref<18x18x32xf32, #tpu.memory_space<vmem>>, vector<18x18x32xf32>,
      %c0_52 = arith.constant 0 : index
      %c0_53 = arith.constant 0 : index
      %c0_54 = arith.constant 0 : index
      %c0_55 = arith.constant 0 : index
      %58 = vector.load %arg2[%c0_52, %c0_53, %c0_54, %c0_55] : memref<1x16x16x32xf32, #tpu.memory_space<vmem>>, vector<1x16x16x32xf32>
      %59 = vector.shape_cast %58 : vector<1x16x16x32xf32> to vector<16x16x32xf32>
      %c1_56 = arith.constant 1 : index
      %c1_57 = arith.constant 1 : index
      %c0_58 = arith.constant 0 : index
      %60 = vector.load %arg7[%c1_56, %c1_57, %c0_58] : memref<18x18x32xf32, #tpu.memory_space<vmem>>, vector<16x16x32xf32>
      tpu.vector_store %arg7[%c1_56, %c1_57, %c0_58], %59 {strides = array<i32>} : memref<18x18x32xf32, #tpu.memory_space<vmem>>, vector<16x16x32xf32>,
      %cst_59 = arith.constant 0.000000e+00 : f32
      %61 = vector.broadcast %cst_59 : f32 to vector<16x16x32xf32>
      %c0_60 = arith.constant 0 : index
      %c0_61 = arith.constant 0 : index
      %c0_62 = arith.constant 0 : index
      %62 = vector.load %arg8[%c0_60, %c0_61, %c0_62] : memref<16x16x32xf32, #tpu.memory_space<vmem>>, vector<16x16x32xf32>
      tpu.vector_store %arg8[%c0_60, %c0_61, %c0_62], %61 {strides = array<i32>} : memref<16x16x32xf32, #tpu.memory_space<vmem>>, vector<16x16x32xf32>,
    } else {
    }
    %c0 = arith.constant 0 : index
    %c0_1 = arith.constant 0 : index
    %c0_2 = arith.constant 0 : index
    %3 = vector.load %arg7[%c0, %c0_1, %c0_2] : memref<18x18x32xf32, #tpu.memory_space<vmem>>, vector<16x16x32xf32>
    %4 = vector.shape_cast %3 : vector<16x16x32xf32> to vector<256x32xf32>
    %5 = arith.truncf %4 : vector<256x32xf32> to vector<256x32xbf16>
    %c0_3 = arith.constant 0 : index
    %c1 = arith.constant 1 : index
    %c0_4 = arith.constant 0 : index
    %6 = vector.load %arg7[%c0_3, %c1, %c0_4] : memref<18x18x32xf32, #tpu.memory_space<vmem>>, vector<16x16x32xf32>
    %7 = vector.shape_cast %6 : vector<16x16x32xf32> to vector<256x32xf32>
    %8 = arith.truncf %7 : vector<256x32xf32> to vector<256x32xbf16>
    %c0_5 = arith.constant 0 : index
    %c2 = arith.constant 2 : index
    %c0_6 = arith.constant 0 : index
    %9 = vector.load %arg7[%c0_5, %c2, %c0_6] : memref<18x18x32xf32, #tpu.memory_space<vmem>>, vector<16x16x32xf32>
    %10 = vector.shape_cast %9 : vector<16x16x32xf32> to vector<256x32xf32>
    %11 = arith.truncf %10 : vector<256x32xf32> to vector<256x32xbf16>
    %c1_7 = arith.constant 1 : index
    %c0_8 = arith.constant 0 : index
    %c0_9 = arith.constant 0 : index
    %12 = vector.load %arg7[%c1_7, %c0_8, %c0_9] : memref<18x18x32xf32, #tpu.memory_space<vmem>>, vector<16x16x32xf32>
    %13 = vector.shape_cast %12 : vector<16x16x32xf32> to vector<256x32xf32>
    %14 = arith.truncf %13 : vector<256x32xf32> to vector<256x32xbf16>
    %c1_10 = arith.constant 1 : index
    %c1_11 = arith.constant 1 : index
    %c0_12 = arith.constant 0 : index
    %15 = vector.load %arg7[%c1_10, %c1_11, %c0_12] : memref<18x18x32xf32, #tpu.memory_space<vmem>>, vector<16x16x32xf32>
    %16 = vector.shape_cast %15 : vector<16x16x32xf32> to vector<256x32xf32>
    %17 = arith.truncf %16 : vector<256x32xf32> to vector<256x32xbf16>
    %c1_13 = arith.constant 1 : index
    %c2_14 = arith.constant 2 : index
    %c0_15 = arith.constant 0 : index
    %18 = vector.load %arg7[%c1_13, %c2_14, %c0_15] : memref<18x18x32xf32, #tpu.memory_space<vmem>>, vector<16x16x32xf32>
    %19 = vector.shape_cast %18 : vector<16x16x32xf32> to vector<256x32xf32>
    %20 = arith.truncf %19 : vector<256x32xf32> to vector<256x32xbf16>
    %c2_16 = arith.constant 2 : index
    %c0_17 = arith.constant 0 : index
    %c0_18 = arith.constant 0 : index
    %21 = vector.load %arg7[%c2_16, %c0_17, %c0_18] : memref<18x18x32xf32, #tpu.memory_space<vmem>>, vector<16x16x32xf32>
    %22 = vector.shape_cast %21 : vector<16x16x32xf32> to vector<256x32xf32>
    %23 = arith.truncf %22 : vector<256x32xf32> to vector<256x32xbf16>
    %c2_19 = arith.constant 2 : index
    %c1_20 = arith.constant 1 : index
    %c0_21 = arith.constant 0 : index
    %24 = vector.load %arg7[%c2_19, %c1_20, %c0_21] : memref<18x18x32xf32, #tpu.memory_space<vmem>>, vector<16x16x32xf32>
    %25 = vector.shape_cast %24 : vector<16x16x32xf32> to vector<256x32xf32>
    %26 = arith.truncf %25 : vector<256x32xf32> to vector<256x32xbf16>
    %c2_22 = arith.constant 2 : index
    %c2_23 = arith.constant 2 : index
    %c0_24 = arith.constant 0 : index
    %27 = vector.load %arg7[%c2_22, %c2_23, %c0_24] : memref<18x18x32xf32, #tpu.memory_space<vmem>>, vector<16x16x32xf32>
    %28 = vector.shape_cast %27 : vector<16x16x32xf32> to vector<256x32xf32>
    %29 = arith.truncf %28 : vector<256x32xf32> to vector<256x32xbf16>
    %30 = tpu.concatenate %5, %8, %11, %14, %17, %20, %23, %26, %29 in 1 : vector<256x32xbf16>, vector<256x32xbf16>, vector<256x32xbf16>, vector<256x32xbf16>, vector<256x32xbf16>, vector<256x32xbf16>, vector<256x32xbf16>, vector<256x32xbf16>, vector<256x32xbf16> -> vector<256x288xbf16>
    %c0_25 = arith.constant 0 : index
    %c0_26 = arith.constant 0 : index
    %c0_27 = arith.constant 0 : index
    %31 = vector.load %arg3[%c0_25, %c0_26, %c0_27] : memref<1x288x32xbf16, #tpu.memory_space<vmem>>, vector<1x288x32xbf16>
    %32 = vector.shape_cast %31 : vector<1x288x32xbf16> to vector<288x32xbf16>
    %cst = arith.constant dense<0.000000e+00> : vector<256x32xf32>
    %33 = tpu.matmul %30, %32, %cst {dimension_numbers = #tpu.dot_dimension_numbers<[1], [0], [0], [1], [0, 0, 1, 1], [], []>} : vector<256x288xbf16>, vector<288x32xbf16>, vector<256x32xf32> -> vector<256x32xf32>
    %c1_28 = arith.constant 1 : index
    %c1_29 = arith.constant 1 : index
    %c0_30 = arith.constant 0 : index
    %34 = vector.load %arg7[%c1_28, %c1_29, %c0_30] : memref<18x18x32xf32, #tpu.memory_space<vmem>>, vector<16x16x32xf32>
    %c0_31 = arith.constant 0 : index
    %c0_32 = arith.constant 0 : index
    %c0_33 = arith.constant 0 : index
    %35 = vector.load %arg8[%c0_31, %c0_32, %c0_33] : memref<16x16x32xf32, #tpu.memory_space<vmem>>, vector<16x16x32xf32>
    %36 = vector.shape_cast %33 : vector<256x32xf32> to vector<16x16x32xf32>
    %37 = arith.addf %36, %35 : vector<16x16x32xf32>
    %c0_34 = arith.constant 0 : index
    %c0_35 = arith.constant 0 : index
    %c0_36 = arith.constant 0 : index
    %38 = vector.load %arg4[%c0_34, %c0_35, %c0_36] : memref<1x1x32xf32, #tpu.memory_space<vmem>>, vector<1x1x32xf32>
    %39 = vector.shape_cast %38 : vector<1x1x32xf32> to vector<32xf32>
    %40 = vector.shape_cast %39 : vector<32xf32> to vector<1x1x32xf32>
    %41 = vector.broadcast %40 : vector<1x1x32xf32> to vector<16x16x32xf32>
    %42 = arith.mulf %37, %41 : vector<16x16x32xf32>
    %c0_37 = arith.constant 0 : index
    %c0_38 = arith.constant 0 : index
    %c0_39 = arith.constant 0 : index
    %43 = vector.load %arg5[%c0_37, %c0_38, %c0_39] : memref<1x1x32xf32, #tpu.memory_space<vmem>>, vector<1x1x32xf32>
    %44 = vector.shape_cast %43 : vector<1x1x32xf32> to vector<32xf32>
    %45 = vector.shape_cast %44 : vector<32xf32> to vector<1x1x32xf32>
    %46 = vector.broadcast %45 : vector<1x1x32xf32> to vector<16x16x32xf32>
    %47 = arith.addf %42, %46 : vector<16x16x32xf32>
    %cst_40 = arith.constant 0.000000e+00 : f32
    %48 = vector.broadcast %cst_40 : f32 to vector<16x16x32xf32>
    %49 = arith.maximumf %47, %48 : vector<16x16x32xf32>
    %50 = arith.addf %35, %34 : vector<16x16x32xf32>
    %c0_41 = arith.constant 0 : index
    %c0_42 = arith.constant 0 : index
    %c0_43 = arith.constant 0 : index
    %51 = vector.load %arg8[%c0_41, %c0_42, %c0_43] : memref<16x16x32xf32, #tpu.memory_space<vmem>>, vector<16x16x32xf32>
    tpu.vector_store %arg8[%c0_41, %c0_42, %c0_43], %50 {strides = array<i32>} : memref<16x16x32xf32, #tpu.memory_space<vmem>>, vector<16x16x32xf32>,
    %c1_44 = arith.constant 1 : index
    %c1_45 = arith.constant 1 : index
    %c0_46 = arith.constant 0 : index
    %52 = vector.load %arg7[%c1_44, %c1_45, %c0_46] : memref<18x18x32xf32, #tpu.memory_space<vmem>>, vector<16x16x32xf32>
    tpu.vector_store %arg7[%c1_44, %c1_45, %c0_46], %49 {strides = array<i32>} : memref<18x18x32xf32, #tpu.memory_space<vmem>>, vector<16x16x32xf32>,
    %c3_i32 = arith.constant 3 : i32
    %53 = arith.cmpi eq, %arg1, %c3_i32 : i32
    %54 = arith.extui %53 : i1 to i32
    %c0_i32_47 = arith.constant 0 : i32
    %55 = arith.cmpi ne, %54, %c0_i32_47 : i32
    scf.if %55 {
      %c0_48 = arith.constant 0 : index
      %c0_49 = arith.constant 0 : index
      %c0_50 = arith.constant 0 : index
      %c0_51 = arith.constant 0 : index
      %56 = vector.load %arg6[%c0_48, %c0_49, %c0_50, %c0_51] : memref<1x16x16x32xf32, #tpu.memory_space<vmem>>, vector<1x16x16x32xf32>
      %57 = vector.shape_cast %56 : vector<1x16x16x32xf32> to vector<16x16x32xf32>
      %58 = vector.shape_cast %49 : vector<16x16x32xf32> to vector<1x16x16x32xf32>
      tpu.vector_store %arg6[%c0_48, %c0_49, %c0_50, %c0_51], %58 {strides = array<i32>} : memref<1x16x16x32xf32, #tpu.memory_space<vmem>>, vector<1x16x16x32xf32>,
    } else {
    }
    return
  }
  func.func @transform_0(%arg0: i32, %arg1: i32) -> (i32, i32, i32, i32) {
    %c0_i32 = arith.constant 0 : i32
    %c0_i32_0 = arith.constant 0 : i32
    %c0_i32_1 = arith.constant 0 : i32
    %c0_i32_2 = arith.constant 0 : i32
    return %arg0, %c0_i32, %c0_i32_0, %c0_i32_1 : i32, i32, i32, i32
  }
  func.func @transform_1(%arg0: i32, %arg1: i32) -> (i32, i32, i32) {
    %c0_i32 = arith.constant 0 : i32
    %c0_i32_0 = arith.constant 0 : i32
    %c0_i32_1 = arith.constant 0 : i32
    return %arg1, %c0_i32, %c0_i32_0 : i32, i32, i32
  }
  func.func @transform_2(%arg0: i32, %arg1: i32) -> (i32, i32, i32) {
    %c0_i32 = arith.constant 0 : i32
    %c0_i32_0 = arith.constant 0 : i32
    %c0_i32_1 = arith.constant 0 : i32
    return %arg1, %c0_i32, %c0_i32_0 : i32, i32, i32
  }
  func.func @transform_3(%arg0: i32, %arg1: i32) -> (i32, i32, i32) {
    %c0_i32 = arith.constant 0 : i32
    %c0_i32_0 = arith.constant 0 : i32
    %c0_i32_1 = arith.constant 0 : i32
    return %arg1, %c0_i32, %c0_i32_0 : i32, i32, i32
  }
  func.func @transform_4(%arg0: i32, %arg1: i32) -> (i32, i32, i32, i32) {
    %c0_i32 = arith.constant 0 : i32
    %c0_i32_0 = arith.constant 0 : i32
    %c0_i32_1 = arith.constant 0 : i32
    %c0_i32_2 = arith.constant 0 : i32
    return %arg0, %c0_i32, %c0_i32_0, %c0_i32_1 : i32, i32, i32, i32
  }
}

</mosaic_0001>

<llo_original>
// kernel: single_level_densenet.1
$region0: #{single_level_densenet.1}
  #allocation0 [shape = 'u32[]', space=smem, size = 0x4, offset = 0x4, fixed_abs, tag = 'smem constant byte address 0x4 - core index']
  #allocation1 [shape = 'u32[144,128]{1,0:T(1,128)}', space=vmem, size = 0x12000, scoped, tag = 'internal scratch']
  #allocation2 [shape = 'f32[18,18,32]{2,1,0:T(8,128)}', space=vmem, size = 0x36000, scoped, tag = 'scratch operand']
  #allocation3 [shape = 'f32[16,16,32]{2,1,0:T(8,128)}', space=vmem, size = 0x20000, scoped, tag = 'scratch operand']
  %s0 = inlined_call_operand.vmem [shape: f32[2,16,16,32], index: 0, kind: input, shape index: {}]
  %s1 = inlined_call_operand.vmem [shape: bf16[4,288,32], index: 1, kind: input, shape index: {}]
  %s2 = inlined_call_operand.vmem [shape: f32[4,1,32], index: 2, kind: input, shape index: {}]
  %s3 = inlined_call_operand.vmem [shape: f32[4,1,32], index: 3, kind: input, shape index: {}]
  %s4 = inlined_call_operand.hbm [shape: f32[2,16,16,32], index: 4, kind: output, shape index: {}]
  %s5 = sld [smem:[#allocation0]]
  $region57: #{single_level_densenet.1} parent=0
    _
  %s7 = ssub.s32 1, %s5
  %s8 = scalar_select 0, %s7, %s5
  $region1: #{single_level_densenet.1} parent=0
    #allocation4 [shape = 'u8[262144]{0}', space=vmem, size = 0x40000, scoped, tag = 'output window, operand 0']
    #allocation5 [shape = 's32[2]{0}', space=sflag, size = 0x8, scoped, tag = 'scoped memory for single_level_densenet.1']
    %9 = vsyncpa [#allocation5], 0
    %s10 = scalar_lea.sflag [#allocation5], 1
    %11 = vsyncpa %s10, 0
    loop: start=0, step=1, limit=10
    $region2: #{single_level_densenet.1} parent=1 // loop_pre_header
      _
    $region3: #{single_level_densenet.1} parent=1 // loop_header
      %s13 = sphi 0, %s17
      %p14 = scmp.ge.s32.totalorder %s13, 10
      %s20 = sphi 0, %s32
      %s21 = sphi 0, %s28
      %s22 = sphi 0, %s20
      %s23 = sphi 0, %s21
      %s24 = sphi 0, %s22
      %s25 = sphi 0, %s23
      %s35 = sphi 0, %s37
      %s38 = sphi 0, %s35
      %s39 = sphi 0, %s38
      %s55 = sphi 0, %s39
      %s61 = sphi 0, %s63
      %s64 = sphi 0, %s61
      %s65 = sphi 0, %s64
      %s81 = sphi 0, %s65
      %s87 = sphi 0, %s89
      %s90 = sphi 0, %s87
      %s91 = sphi 0, %s90
      %s107 = sphi 0, %s91
      %s113 = sphi 0, %s115
      %s116 = sphi 0, %s113
      %s117 = sphi 0, %s116
      %s133 = sphi 0, %s117
      %s139 = sphi 0, %s141
      %s142 = sphi 0, %s139
      %s143 = sphi 0, %s142
      %s159 = sphi 0, %s143
    $region4: #{single_level_densenet.1} parent=1 // loop_header_branch
      %16 = sbr.rel (%p14) target = $region8
    $region5: #{single_level_densenet.1} parent=1 // loop_body
      %s18 = ssub.s32 %s13, 1
      %s19 = ssub.s32 %s13, 2
      %s26 = sadd.s32 1, %s21
      %p27 = scmp.ge.s32.totalorder %s26, 4
      %s28 = scalar_select %p27, 0, %s26
      %s29 = sadd.s32 1, %s20
      %s30 = scalar_select %p27, %s29, %s20
      %p31 = scmp.ge.s32.totalorder %s30, 2
      %s32 = scalar_select %p31, 0, %s30
      %s33 = ssub.s32 %s20, %s32
      %p34 = scmp.eq.s32.totalorder %s33, 0
      %s36 = sadd.s32 %s35, 1
      %s37 = scalar_select %p34, %s35, %s36
      %p40 = pneg %p34
      %p41 = scmp.eq.s32.totalorder %s13, 7
      %p42 = por %p40, %p41
      %p43 = scmp.ne.s32.totalorder %s35, %s38
      %p44 = scmp.eq.s32.totalorder %s13, 0
      %p45 = por %p43, %p44
      %p46 = scmp.ne.s32.totalorder %s35, %s38
      %p47 = scmp.eq.s32.totalorder %s18, 7
      %p48 = por %p46, %p47
      %p49 = scmp.ne.s32.totalorder %s38, %s39
      %p50 = scmp.eq.s32.totalorder %s18, 0
      %p51 = por %p49, %p50
      %p52 = scmp.ne.s32.totalorder %s38, %s39
      %p53 = scmp.eq.s32.totalorder %s19, 7
      %p54 = por %p52, %p53
      %p56 = scmp.ne.s32.totalorder %s39, %s55
      %p57 = scmp.eq.s32.totalorder %s19, 0
      %p58 = por %p56, %p57
      %s59 = ssub.s32 %s21, %s28
      %p60 = scmp.eq.s32.totalorder %s59, 0
      %s62 = sadd.s32 %s61, 1
      %s63 = scalar_select %p60, %s61, %s62
      %p66 = pneg %p60
      %p67 = scmp.eq.s32.totalorder %s13, 7
      %p68 = por %p66, %p67
      %p69 = scmp.ne.s32.totalorder %s61, %s64
      %p70 = scmp.eq.s32.totalorder %s13, 0
      %p71 = por %p69, %p70
      %p72 = scmp.ne.s32.totalorder %s61, %s64
      %p73 = scmp.eq.s32.totalorder %s18, 7
      %p74 = por %p72, %p73
      %p75 = scmp.ne.s32.totalorder %s64, %s65
      %p76 = scmp.eq.s32.totalorder %s18, 0
      %p77 = por %p75, %p76
      %p78 = scmp.ne.s32.totalorder %s64, %s65
      %p79 = scmp.eq.s32.totalorder %s19, 7
      %p80 = por %p78, %p79
      %p82 = scmp.ne.s32.totalorder %s65, %s81
      %p83 = scmp.eq.s32.totalorder %s19, 0
      %p84 = por %p82, %p83
      %s85 = ssub.s32 %s21, %s28
      %p86 = scmp.eq.s32.totalorder %s85, 0
      %s88 = sadd.s32 %s87, 1
      %s89 = scalar_select %p86, %s87, %s88
      %p92 = pneg %p86
      %p93 = scmp.eq.s32.totalorder %s13, 7
      %p94 = por %p92, %p93
      %p95 = scmp.ne.s32.totalorder %s87, %s90
      %p96 = scmp.eq.s32.totalorder %s13, 0
      %p97 = por %p95, %p96
      %p98 = scmp.ne.s32.totalorder %s87, %s90
      %p99 = scmp.eq.s32.totalorder %s18, 7
      %p100 = por %p98, %p99
      %p101 = scmp.ne.s32.totalorder %s90, %s91
      %p102 = scmp.eq.s32.totalorder %s18, 0
      %p103 = por %p101, %p102
      %p104 = scmp.ne.s32.totalorder %s90, %s91
      %p105 = scmp.eq.s32.totalorder %s19, 7
      %p106 = por %p104, %p105
      %p108 = scmp.ne.s32.totalorder %s91, %s107
      %p109 = scmp.eq.s32.totalorder %s19, 0
      %p110 = por %p108, %p109
      %s111 = ssub.s32 %s21, %s28
      %p112 = scmp.eq.s32.totalorder %s111, 0
      %s114 = sadd.s32 %s113, 1
      %s115 = scalar_select %p112, %s113, %s114
      %p118 = pneg %p112
      %p119 = scmp.eq.s32.totalorder %s13, 7
      %p120 = por %p118, %p119
      %p121 = scmp.ne.s32.totalorder %s113, %s116
      %p122 = scmp.eq.s32.totalorder %s13, 0
      %p123 = por %p121, %p122
      %p124 = scmp.ne.s32.totalorder %s113, %s116
      %p125 = scmp.eq.s32.totalorder %s18, 7
      %p126 = por %p124, %p125
      %p127 = scmp.ne.s32.totalorder %s116, %s117
      %p128 = scmp.eq.s32.totalorder %s18, 0
      %p129 = por %p127, %p128
      %p130 = scmp.ne.s32.totalorder %s116, %s117
      %p131 = scmp.eq.s32.totalorder %s19, 7
      %p132 = por %p130, %p131
      %p134 = scmp.ne.s32.totalorder %s117, %s133
      %p135 = scmp.eq.s32.totalorder %s19, 0
      %p136 = por %p134, %p135
      %s137 = ssub.s32 %s20, %s32
      %p138 = scmp.eq.s32.totalorder %s137, 0
      %s140 = sadd.s32 %s139, 1
      %s141 = scalar_select %p138, %s139, %s140
      %p144 = pneg %p138
      %p145 = scmp.eq.s32.totalorder %s13, 7
      %p146 = por %p144, %p145
      %p147 = scmp.ne.s32.totalorder %s139, %s142
      %p148 = scmp.eq.s32.totalorder %s13, 0
      %p149 = por %p147, %p148
      %p150 = scmp.ne.s32.totalorder %s139, %s142
      %p151 = scmp.eq.s32.totalorder %s18, 7
      %p152 = por %p150, %p151
      %p153 = scmp.ne.s32.totalorder %s142, %s143
      %p154 = scmp.eq.s32.totalorder %s18, 0
      %p155 = por %p153, %p154
      %p156 = scmp.ne.s32.totalorder %s142, %s143
      %p157 = scmp.eq.s32.totalorder %s19, 7
      %p158 = por %p156, %p157
      %p160 = scmp.ne.s32.totalorder %s143, %s159
      %p161 = scmp.eq.s32.totalorder %s19, 0
      %p162 = por %p160, %p161
      %p163 = scmp.le.s32.totalorder 1, %s13
      %p164 = scmp.lt.s32.totalorder %s13, 9
      %p165 = pnand %p163, %p164
      %p166 = pneg %p165
      // Predicated region
      $region9: #{single_level_densenet.1} parent=5 // pred_check
        _
      $region10: #{single_level_densenet.1} parent=5 // pred_check_branch
        %168 = sbr.rel (%p165) target = $region12
      $region11: #{single_level_densenet.1} parent=5 // pred_region
        %s169 = ssub.s32 %s13, 1
      $region12: #{single_level_densenet.1} parent=5 // pred_fallthru
        _
      %p170 = scmp.lt.s32.totalorder %s13, 8
      // Predicated region
      $region13: #{single_level_densenet.1} parent=5 // pred_check
        %p171 = pneg %p170
      $region14: #{single_level_densenet.1} parent=5 // pred_check_branch
        %173 = sbr.rel (%p171) target = $region16
      $region15: #{single_level_densenet.1} parent=5 // pred_region
        // Predicated region
        $region17: #{single_level_densenet.1} parent=15 // pred_check
          %p174 = pneg %p45
        $region18: #{single_level_densenet.1} parent=15 // pred_check_branch
          %176 = sbr.rel (%p174) target = $region20
        $region19: #{single_level_densenet.1} parent=15 // pred_region
          %p177 = scmp.lt.s32.totalorder %s20, 1
          %s178 = scalar_select %p177, %s20, 1
          %s179 = smul.addr %s178, 32
          %s180 = smul.addr %s179, 8
          %s181 = scalar_lea.vmem %s0, %s180
        $region20: #{single_level_densenet.1} parent=15 // pred_fallthru
          _
        // Predicated region
        $region21: #{single_level_densenet.1} parent=15 // pred_check
          %p182 = pneg %p71
        $region22: #{single_level_densenet.1} parent=15 // pred_check_branch
          %184 = sbr.rel (%p182) target = $region24
        $region23: #{single_level_densenet.1} parent=15 // pred_region
          %p185 = scmp.lt.s32.totalorder %s21, 3
          %s186 = scalar_select %p185, %s21, 3
          %s187 = smul.addr %s186, 36
          %s188 = smul.addr %s187, 4
          %s189 = scalar_lea.vmem %s1, %s188
        $region24: #{single_level_densenet.1} parent=15 // pred_fallthru
          _
        // Predicated region
        $region25: #{single_level_densenet.1} parent=15 // pred_check
          %p190 = pneg %p97
        $region26: #{single_level_densenet.1} parent=15 // pred_check_branch
          %192 = sbr.rel (%p190) target = $region28
        $region27: #{single_level_densenet.1} parent=15 // pred_region
          %p193 = scmp.lt.s32.totalorder %s21, 3
          %s194 = scalar_select %p193, %s21, 3
          %s195 = scalar_lea.vmem %s2, %s194
        $region28: #{single_level_densenet.1} parent=15 // pred_fallthru
          _
        // Predicated region
        $region29: #{single_level_densenet.1} parent=15 // pred_check
          %p196 = pneg %p123
        $region30: #{single_level_densenet.1} parent=15 // pred_check_branch
          %198 = sbr.rel (%p196) target = $region32
        $region31: #{single_level_densenet.1} parent=15 // pred_region
          %p199 = scmp.lt.s32.totalorder %s21, 3
          %s200 = scalar_select %p199, %s21, 3
          %s201 = scalar_lea.vmem %s3, %s200
        $region32: #{single_level_densenet.1} parent=15 // pred_fallthru
          _
      $region16: #{single_level_densenet.1} parent=5 // pred_fallthru
        _
      %p202 = scmp.le.s32.totalorder 1, %s13
      %p203 = scmp.lt.s32.totalorder %s13, 9
      %p204 = pnand %p202, %p203
      %p205 = pneg %p204
      // Predicated region
      $region33: #{single_level_densenet.1} parent=5 // pred_check
        _
      $region34: #{single_level_densenet.1} parent=5 // pred_check_branch
        %207 = sbr.rel (%p204) target = $region36
      $region35: #{single_level_densenet.1} parent=5 // pred_region
        %s208 = ssub.s32 %s13, 1
        %p209 = scmp.lt.s32.totalorder %s22, 1
        %s210 = scalar_select %p209, %s22, 1
        %s211 = smul.addr %s210, 32
        %s212 = smul.addr %s211, 8
        %s213 = scalar_lea.vmem %s0, %s212
        %p214 = pneg %p51
        %p215 = pneg %p48
        %p216 = scmp.lt.s32.totalorder %s23, 3
        %s217 = scalar_select %p216, %s23, 3
        %s218 = smul.addr %s217, 36
        %s219 = smul.addr %s218, 4
        %s220 = scalar_lea.vmem %s1, %s219
        %p221 = pneg %p77
        %p222 = pneg %p74
        %p223 = scmp.lt.s32.totalorder %s23, 3
        %s224 = scalar_select %p223, %s23, 3
        %s225 = scalar_lea.vmem %s2, %s224
        %p226 = pneg %p103
        %p227 = pneg %p100
        %p228 = scmp.lt.s32.totalorder %s23, 3
        %s229 = scalar_select %p228, %s23, 3
        %s230 = scalar_lea.vmem %s3, %s229
        %p231 = pneg %p129
        %p232 = pneg %p126
        %p233 = pneg %p155
        %p234 = pneg %p152
        %s235 = sand.u32 %s142, 1
        %s236 = scalar_lea.sflag [#allocation5], %s235
        %s237 = sand.u32 %s142, 1
        %s238 = smul.addr %s237, 256
        %s239 = scalar_lea.vmem [#allocation4], %s238
        %p240 = scmp.lt.s32.totalorder %s22, 1
        %s241 = scalar_select %p240, %s22, 1
        %s242 = smul.addr %s241, 32
        %s243 = smul.addr %s242, 8
        %s244 = scalar_lea.vmem %s0, %s243
        %p245 = scmp.lt.s32.totalorder %s23, 3
        %s246 = scalar_select %p245, %s23, 3
        %s247 = smul.addr %s246, 36
        %s248 = smul.addr %s247, 4
        %s249 = scalar_lea.vmem %s1, %s248
        %p250 = scmp.lt.s32.totalorder %s23, 3
        %s251 = scalar_select %p250, %s23, 3
        %s252 = scalar_lea.vmem %s2, %s251
        %p253 = scmp.lt.s32.totalorder %s23, 3
        %s254 = scalar_select %p253, %s23, 3
        %s255 = scalar_lea.vmem %s3, %s254
        %p257 = scmp.eq.s32.totalorder %s23, 0
        // Predicated region
        $region37: #{single_level_densenet.1} parent=35 // pred_check
          %p258 = pneg %p257
        $region38: #{single_level_densenet.1} parent=35 // pred_check_branch
          %260 = sbr.rel (%p258) target = $region40
        $region39: #{single_level_densenet.1} parent=35 // pred_region
          %vm261 = vcmask 261120
          %262 = vst.msk [vmem:[#allocation2] sm:$0xff] %vm261, 0.0
          %263 = vst.msk [vmem:[#allocation2 + $0x8] sm:$0xff] %vm261, 0.0
          %vm264 = vcmask 254976
          %265 = vst.msk [vmem:[#allocation2 + $0x10] sm:$0x3] %vm264, 0.0
          %266 = vst.msk [vmem:[#allocation2 + $0x18] sm:$0xff] %vm261, 0.0
          %267 = vst.msk [vmem:[#allocation2 + $0x20] sm:$0xff] %vm261, 0.0
          %268 = vst.msk [vmem:[#allocation2 + $0x28] sm:$0x3] %vm264, 0.0
          %269 = vst.msk [vmem:[#allocation2 + $0x30] sm:$0xff] %vm261, 0.0
          %270 = vst.msk [vmem:[#allocation2 + $0x38] sm:$0xff] %vm261, 0.0
          %271 = vst.msk [vmem:[#allocation2 + $0x40] sm:$0x3] %vm264, 0.0
          %272 = vst.msk [vmem:[#allocation2 + $0x48] sm:$0xff] %vm261, 0.0
          %273 = vst.msk [vmem:[#allocation2 + $0x50] sm:$0xff] %vm261, 0.0
          %274 = vst.msk [vmem:[#allocation2 + $0x58] sm:$0x3] %vm264, 0.0
          %275 = vst.msk [vmem:[#allocation2 + $0x60] sm:$0xff] %vm261, 0.0
          %276 = vst.msk [vmem:[#allocation2 + $0x68] sm:$0xff] %vm261, 0.0
          %277 = vst.msk [vmem:[#allocation2 + $0x70] sm:$0x3] %vm264, 0.0
          %278 = vst.msk [vmem:[#allocation2 + $0x78] sm:$0xff] %vm261, 0.0
          %279 = vst.msk [vmem:[#allocation2 + $0x80] sm:$0xff] %vm261, 0.0
          %280 = vst.msk [vmem:[#allocation2 + $0x88] sm:$0x3] %vm264, 0.0
          %281 = vst.msk [vmem:[#allocation2 + $0x90] sm:$0xff] %vm261, 0.0
          %282 = vst.msk [vmem:[#allocation2 + $0x98] sm:$0xff] %vm261, 0.0
          %283 = vst.msk [vmem:[#allocation2 + $0xa0] sm:$0x3] %vm264, 0.0
          %284 = vst.msk [vmem:[#allocation2 + $0xa8] sm:$0xff] %vm261, 0.0
          %285 = vst.msk [vmem:[#allocation2 + $0xb0] sm:$0xff] %vm261, 0.0
          %286 = vst.msk [vmem:[#allocation2 + $0xb8] sm:$0x3] %vm264, 0.0
          %287 = vst.msk [vmem:[#allocation2 + $0xc0] sm:$0xff] %vm261, 0.0
          %288 = vst.msk [vmem:[#allocation2 + $0xc8] sm:$0xff] %vm261, 0.0
          %289 = vst.msk [vmem:[#allocation2 + $0xd0] sm:$0x3] %vm264, 0.0
          %290 = vst.msk [vmem:[#allocation2 + $0xd8] sm:$0xff] %vm261, 0.0
          %291 = vst.msk [vmem:[#allocation2 + $0xe0] sm:$0xff] %vm261, 0.0
          %292 = vst.msk [vmem:[#allocation2 + $0xe8] sm:$0x3] %vm264, 0.0
          %293 = vst.msk [vmem:[#allocation2 + $0xf0] sm:$0xff] %vm261, 0.0
          %294 = vst.msk [vmem:[#allocation2 + $0xf8] sm:$0xff] %vm261, 0.0
          %295 = vst.msk [vmem:[#allocation2 + $0x100] sm:$0x3] %vm264, 0.0
          %296 = vst.msk [vmem:[#allocation2 + $0x108] sm:$0xff] %vm261, 0.0
          %297 = vst.msk [vmem:[#allocation2 + $0x110] sm:$0xff] %vm261, 0.0
          %298 = vst.msk [vmem:[#allocation2 + $0x118] sm:$0x3] %vm264, 0.0
          %299 = vst.msk [vmem:[#allocation2 + $0x120] sm:$0xff] %vm261, 0.0
          %300 = vst.msk [vmem:[#allocation2 + $0x128] sm:$0xff] %vm261, 0.0
          %301 = vst.msk [vmem:[#allocation2 + $0x130] sm:$0x3] %vm264, 0.0
          %302 = vst.msk [vmem:[#allocation2 + $0x138] sm:$0xff] %vm261, 0.0
          %303 = vst.msk [vmem:[#allocation2 + $0x140] sm:$0xff] %vm261, 0.0
          %304 = vst.msk [vmem:[#allocation2 + $0x148] sm:$0x3] %vm264, 0.0
          %305 = vst.msk [vmem:[#allocation2 + $0x150] sm:$0xff] %vm261, 0.0
          %306 = vst.msk [vmem:[#allocation2 + $0x158] sm:$0xff] %vm261, 0.0
          %307 = vst.msk [vmem:[#allocation2 + $0x160] sm:$0x3] %vm264, 0.0
          %308 = vst.msk [vmem:[#allocation2 + $0x168] sm:$0xff] %vm261, 0.0
          %309 = vst.msk [vmem:[#allocation2 + $0x170] sm:$0xff] %vm261, 0.0
          %310 = vst.msk [vmem:[#allocation2 + $0x178] sm:$0x3] %vm264, 0.0
          %311 = vst.msk [vmem:[#allocation2 + $0x180] sm:$0xff] %vm261, 0.0
          %312 = vst.msk [vmem:[#allocation2 + $0x188] sm:$0xff] %vm261, 0.0
          %313 = vst.msk [vmem:[#allocation2 + $0x190] sm:$0x3] %vm264, 0.0
          %314 = vst.msk [vmem:[#allocation2 + $0x198] sm:$0xff] %vm261, 0.0
          %315 = vst.msk [vmem:[#allocation2 + $0x1a0] sm:$0xff] %vm261, 0.0
          %316 = vst.msk [vmem:[#allocation2 + $0x1a8] sm:$0x3] %vm264, 0.0
          %v317 = vld [vmem:[%s244] sm:$0xff]
          %v318 = vld [vmem:[%s244 + $0x8] sm:$0xff]
          %v319 = vld [vmem:[%s244 + $0x10] sm:$0xff]
          %v320 = vld [vmem:[%s244 + $0x18] sm:$0xff]
          %v321 = vld [vmem:[%s244 + $0x20] sm:$0xff]
          %v322 = vld [vmem:[%s244 + $0x28] sm:$0xff]
          %v323 = vld [vmem:[%s244 + $0x30] sm:$0xff]
          %v324 = vld [vmem:[%s244 + $0x38] sm:$0xff]
          %v325 = vld [vmem:[%s244 + $0x40] sm:$0xff]
          %v326 = vld [vmem:[%s244 + $0x48] sm:$0xff]
          %v327 = vld [vmem:[%s244 + $0x50] sm:$0xff]
          %v328 = vld [vmem:[%s244 + $0x58] sm:$0xff]
          %v329 = vld [vmem:[%s244 + $0x60] sm:$0xff]
          %v330 = vld [vmem:[%s244 + $0x68] sm:$0xff]
          %v331 = vld [vmem:[%s244 + $0x70] sm:$0xff]
          %v332 = vld [vmem:[%s244 + $0x78] sm:$0xff]
          %v333 = vld [vmem:[%s244 + $0x80] sm:$0xff]
          %v334 = vld [vmem:[%s244 + $0x88] sm:$0xff]
          %v335 = vld [vmem:[%s244 + $0x90] sm:$0xff]
          %v336 = vld [vmem:[%s244 + $0x98] sm:$0xff]
          %v337 = vld [vmem:[%s244 + $0xa0] sm:$0xff]
          %v338 = vld [vmem:[%s244 + $0xa8] sm:$0xff]
          %v339 = vld [vmem:[%s244 + $0xb0] sm:$0xff]
          %v340 = vld [vmem:[%s244 + $0xb8] sm:$0xff]
          %v341 = vld [vmem:[%s244 + $0xc0] sm:$0xff]
          %v342 = vld [vmem:[%s244 + $0xc8] sm:$0xff]
          %v343 = vld [vmem:[%s244 + $0xd0] sm:$0xff]
          %v344 = vld [vmem:[%s244 + $0xd8] sm:$0xff]
          %v345 = vld [vmem:[%s244 + $0xe0] sm:$0xff]
          %v346 = vld [vmem:[%s244 + $0xe8] sm:$0xff]
          %v347 = vld [vmem:[%s244 + $0xf0] sm:$0xff]
          %v348 = vld [vmem:[%s244 + $0xf8] sm:$0xff]
          %s349 = scalar_lea.vmem [#allocation2], 24
          %350 = vst.msk [vmem:[%s349 + $0x1] sm:$0xff] %vm261, %v317
          %351 = vst.msk [vmem:[%s349 + $0x9] sm:$0xff] %vm261, %v318
          %352 = vst.msk [vmem:[%s349 + $0x19] sm:$0xff] %vm261, %v319
          %353 = vst.msk [vmem:[%s349 + $0x21] sm:$0xff] %vm261, %v320
          %354 = vst.msk [vmem:[%s349 + $0x31] sm:$0xff] %vm261, %v321
          %355 = vst.msk [vmem:[%s349 + $0x39] sm:$0xff] %vm261, %v322
          %356 = vst.msk [vmem:[%s349 + $0x49] sm:$0xff] %vm261, %v323
          %357 = vst.msk [vmem:[%s349 + $0x51] sm:$0xff] %vm261, %v324
          %358 = vst.msk [vmem:[%s349 + $0x61] sm:$0xff] %vm261, %v325
          %359 = vst.msk [vmem:[%s349 + $0x69] sm:$0xff] %vm261, %v326
          %360 = vst.msk [vmem:[%s349 + $0x79] sm:$0xff] %vm261, %v327
          %361 = vst.msk [vmem:[%s349 + $0x81] sm:$0xff] %vm261, %v328
          %362 = vst.msk [vmem:[%s349 + $0x91] sm:$0xff] %vm261, %v329
          %363 = vst.msk [vmem:[%s349 + $0x99] sm:$0xff] %vm261, %v330
          %364 = vst.msk [vmem:[%s349 + $0xa9] sm:$0xff] %vm261, %v331
          %365 = vst.msk [vmem:[%s349 + $0xb1] sm:$0xff] %vm261, %v332
          %366 = vst.msk [vmem:[%s349 + $0xc1] sm:$0xff] %vm261, %v333
          %367 = vst.msk [vmem:[%s349 + $0xc9] sm:$0xff] %vm261, %v334
          %368 = vst.msk [vmem:[%s349 + $0xd9] sm:$0xff] %vm261, %v335
          %369 = vst.msk [vmem:[%s349 + $0xe1] sm:$0xff] %vm261, %v336
          %370 = vst.msk [vmem:[%s349 + $0xf1] sm:$0xff] %vm261, %v337
          %371 = vst.msk [vmem:[%s349 + $0xf9] sm:$0xff] %vm261, %v338
          %372 = vst.msk [vmem:[%s349 + $0x109] sm:$0xff] %vm261, %v339
          %373 = vst.msk [vmem:[%s349 + $0x111] sm:$0xff] %vm261, %v340
          %374 = vst.msk [vmem:[%s349 + $0x121] sm:$0xff] %vm261, %v341
          %375 = vst.msk [vmem:[%s349 + $0x129] sm:$0xff] %vm261, %v342
          %376 = vst.msk [vmem:[%s349 + $0x139] sm:$0xff] %vm261, %v343
          %377 = vst.msk [vmem:[%s349 + $0x141] sm:$0xff] %vm261, %v344
          %378 = vst.msk [vmem:[%s349 + $0x151] sm:$0xff] %vm261, %v345
          %379 = vst.msk [vmem:[%s349 + $0x159] sm:$0xff] %vm261, %v346
          %380 = vst.msk [vmem:[%s349 + $0x169] sm:$0xff] %vm261, %v347
          %381 = vst.msk [vmem:[%s349 + $0x171] sm:$0xff] %vm261, %v348
          %382 = vst.msk [vmem:[#allocation3] sm:$0xff] %vm261, 0.0
          %383 = vst.msk [vmem:[#allocation3 + $0x8] sm:$0xff] %vm261, 0.0
          %384 = vst.msk [vmem:[#allocation3 + $0x10] sm:$0xff] %vm261, 0.0
          %385 = vst.msk [vmem:[#allocation3 + $0x18] sm:$0xff] %vm261, 0.0
          %386 = vst.msk [vmem:[#allocation3 + $0x20] sm:$0xff] %vm261, 0.0
          %387 = vst.msk [vmem:[#allocation3 + $0x28] sm:$0xff] %vm261, 0.0
          %388 = vst.msk [vmem:[#allocation3 + $0x30] sm:$0xff] %vm261, 0.0
          %389 = vst.msk [vmem:[#allocation3 + $0x38] sm:$0xff] %vm261, 0.0
          %390 = vst.msk [vmem:[#allocation3 + $0x40] sm:$0xff] %vm261, 0.0
          %391 = vst.msk [vmem:[#allocation3 + $0x48] sm:$0xff] %vm261, 0.0
          %392 = vst.msk [vmem:[#allocation3 + $0x50] sm:$0xff] %vm261, 0.0
          %393 = vst.msk [vmem:[#allocation3 + $0x58] sm:$0xff] %vm261, 0.0
          %394 = vst.msk [vmem:[#allocation3 + $0x60] sm:$0xff] %vm261, 0.0
          %395 = vst.msk [vmem:[#allocation3 + $0x68] sm:$0xff] %vm261, 0.0
          %396 = vst.msk [vmem:[#allocation3 + $0x70] sm:$0xff] %vm261, 0.0
          %397 = vst.msk [vmem:[#allocation3 + $0x78] sm:$0xff] %vm261, 0.0
          %398 = vst.msk [vmem:[#allocation3 + $0x80] sm:$0xff] %vm261, 0.0
          %399 = vst.msk [vmem:[#allocation3 + $0x88] sm:$0xff] %vm261, 0.0
          %400 = vst.msk [vmem:[#allocation3 + $0x90] sm:$0xff] %vm261, 0.0
          %401 = vst.msk [vmem:[#allocation3 + $0x98] sm:$0xff] %vm261, 0.0
          %402 = vst.msk [vmem:[#allocation3 + $0xa0] sm:$0xff] %vm261, 0.0
          %403 = vst.msk [vmem:[#allocation3 + $0xa8] sm:$0xff] %vm261, 0.0
          %404 = vst.msk [vmem:[#allocation3 + $0xb0] sm:$0xff] %vm261, 0.0
          %405 = vst.msk [vmem:[#allocation3 + $0xb8] sm:$0xff] %vm261, 0.0
          %406 = vst.msk [vmem:[#allocation3 + $0xc0] sm:$0xff] %vm261, 0.0
          %407 = vst.msk [vmem:[#allocation3 + $0xc8] sm:$0xff] %vm261, 0.0
          %408 = vst.msk [vmem:[#allocation3 + $0xd0] sm:$0xff] %vm261, 0.0
          %409 = vst.msk [vmem:[#allocation3 + $0xd8] sm:$0xff] %vm261, 0.0
          %410 = vst.msk [vmem:[#allocation3 + $0xe0] sm:$0xff] %vm261, 0.0
          %411 = vst.msk [vmem:[#allocation3 + $0xe8] sm:$0xff] %vm261, 0.0
          %412 = vst.msk [vmem:[#allocation3 + $0xf0] sm:$0xff] %vm261, 0.0
          %413 = vst.msk [vmem:[#allocation3 + $0xf8] sm:$0xff] %vm261, 0.0
        $region40: #{single_level_densenet.1} parent=35 // pred_fallthru
          _
        %v414 = vld [vmem:[#allocation2] sm:$0xff]
        %v415 = vld [vmem:[#allocation2 + $0x8] sm:$0xff]
        %v416 = vld [vmem:[#allocation2 + $0x18] sm:$0xff]
        %v417 = vld [vmem:[#allocation2 + $0x20] sm:$0xff]
        %v418 = vld [vmem:[#allocation2 + $0x30] sm:$0xff]
        %v419 = vld [vmem:[#allocation2 + $0x38] sm:$0xff]
        %v420 = vld [vmem:[#allocation2 + $0x48] sm:$0xff]
        %v421 = vld [vmem:[#allocation2 + $0x50] sm:$0xff]
        %v422 = vld [vmem:[#allocation2 + $0x60] sm:$0xff]
        %v423 = vld [vmem:[#allocation2 + $0x68] sm:$0xff]
        %v424 = vld [vmem:[#allocation2 + $0x78] sm:$0xff]
        %v425 = vld [vmem:[#allocation2 + $0x80] sm:$0xff]
        %v426 = vld [vmem:[#allocation2 + $0x90] sm:$0xff]
        %v427 = vld [vmem:[#allocation2 + $0x98] sm:$0xff]
        %v428 = vld [vmem:[#allocation2 + $0xa8] sm:$0xff]
        %v429 = vld [vmem:[#allocation2 + $0xb0] sm:$0xff]
        %v430 = vld [vmem:[#allocation2 + $0xc0] sm:$0xff]
        %v431 = vld [vmem:[#allocation2 + $0xc8] sm:$0xff]
        %v432 = vld [vmem:[#allocation2 + $0xd8] sm:$0xff]
        %v433 = vld [vmem:[#allocation2 + $0xe0] sm:$0xff]
        %v434 = vld [vmem:[#allocation2 + $0xf0] sm:$0xff]
        %v435 = vld [vmem:[#allocation2 + $0xf8] sm:$0xff]
        %v436 = vld [vmem:[#allocation2 + $0x108] sm:$0xff]
        %v437 = vld [vmem:[#allocation2 + $0x110] sm:$0xff]
        %v438 = vld [vmem:[#allocation2 + $0x120] sm:$0xff]
        %v439 = vld [vmem:[#allocation2 + $0x128] sm:$0xff]
        %v440 = vld [vmem:[#allocation2 + $0x138] sm:$0xff]
        %v441 = vld [vmem:[#allocation2 + $0x140] sm:$0xff]
        %v442 = vld [vmem:[#allocation2 + $0x150] sm:$0xff]
        %v443 = vld [vmem:[#allocation2 + $0x158] sm:$0xff]
        %v444 = vld [vmem:[#allocation2 + $0x168] sm:$0xff]
        %v445 = vld [vmem:[#allocation2 + $0x170] sm:$0xff]
        %v446 = vpack.c.bf16 %v415, %v414
        %v447 = vpack.c.bf16 %v417, %v416
        %v448 = vpack.c.bf16 %v419, %v418
        %v449 = vpack.c.bf16 %v421, %v420
        %v450 = vpack.c.bf16 %v423, %v422
        %v451 = vpack.c.bf16 %v425, %v424
        %v452 = vpack.c.bf16 %v427, %v426
        %v453 = vpack.c.bf16 %v429, %v428
        %v454 = vpack.c.bf16 %v431, %v430
        %v455 = vpack.c.bf16 %v433, %v432
        %v456 = vpack.c.bf16 %v435, %v434
        %v457 = vpack.c.bf16 %v437, %v436
        %v458 = vpack.c.bf16 %v439, %v438
        %v459 = vpack.c.bf16 %v441, %v440
        %v460 = vpack.c.bf16 %v443, %v442
        %v461 = vpack.c.bf16 %v445, %v444
        %v462 = vld [vmem:[#allocation2 + $0x1] sm:$0xff]
        %v463 = vld [vmem:[#allocation2 + $0x9] sm:$0xff]
        %v464 = vld [vmem:[#allocation2 + $0x19] sm:$0xff]
        %v465 = vld [vmem:[#allocation2 + $0x21] sm:$0xff]
        %v466 = vld [vmem:[#allocation2 + $0x31] sm:$0xff]
        %v467 = vld [vmem:[#allocation2 + $0x39] sm:$0xff]
        %v468 = vld [vmem:[#allocation2 + $0x49] sm:$0xff]
        %v469 = vld [vmem:[#allocation2 + $0x51] sm:$0xff]
        %v470 = vld [vmem:[#allocation2 + $0x61] sm:$0xff]
        %v471 = vld [vmem:[#allocation2 + $0x69] sm:$0xff]
        %v472 = vld [vmem:[#allocation2 + $0x79] sm:$0xff]
        %v473 = vld [vmem:[#allocation2 + $0x81] sm:$0xff]
        %v474 = vld [vmem:[#allocation2 + $0x91] sm:$0xff]
        %v475 = vld [vmem:[#allocation2 + $0x99] sm:$0xff]
        %v476 = vld [vmem:[#allocation2 + $0xa9] sm:$0xff]
        %v477 = vld [vmem:[#allocation2 + $0xb1] sm:$0xff]
        %v478 = vld [vmem:[#allocation2 + $0xc1] sm:$0xff]
        %v479 = vld [vmem:[#allocation2 + $0xc9] sm:$0xff]
        %v480 = vld [vmem:[#allocation2 + $0xd9] sm:$0xff]
        %v481 = vld [vmem:[#allocation2 + $0xe1] sm:$0xff]
        %v482 = vld [vmem:[#allocation2 + $0xf1] sm:$0xff]
        %v483 = vld [vmem:[#allocation2 + $0xf9] sm:$0xff]
        %v484 = vld [vmem:[#allocation2 + $0x109] sm:$0xff]
        %v485 = vld [vmem:[#allocation2 + $0x111] sm:$0xff]
        %v486 = vld [vmem:[#allocation2 + $0x121] sm:$0xff]
        %v487 = vld [vmem:[#allocation2 + $0x129] sm:$0xff]
        %v488 = vld [vmem:[#allocation2 + $0x139] sm:$0xff]
        %v489 = vld [vmem:[#allocation2 + $0x141] sm:$0xff]
        %v490 = vld [vmem:[#allocation2 + $0x151] sm:$0xff]
        %v491 = vld [vmem:[#allocation2 + $0x159] sm:$0xff]
        %v492 = vld [vmem:[#allocation2 + $0x169] sm:$0xff]
        %v493 = vld [vmem:[#allocation2 + $0x171] sm:$0xff]
        %v494 = vpack.c.bf16 %v463, %v462
        %v495 = vpack.c.bf16 %v465, %v464
        %v496 = vpack.c.bf16 %v467, %v466
        %v497 = vpack.c.bf16 %v469, %v468
        %v498 = vpack.c.bf16 %v471, %v470
        %v499 = vpack.c.bf16 %v473, %v472
        %v500 = vpack.c.bf16 %v475, %v474
        %v501 = vpack.c.bf16 %v477, %v476
        %v502 = vpack.c.bf16 %v479, %v478
        %v503 = vpack.c.bf16 %v481, %v480
        %v504 = vpack.c.bf16 %v483, %v482
        %v505 = vpack.c.bf16 %v485, %v484
        %v506 = vpack.c.bf16 %v487, %v486
        %v507 = vpack.c.bf16 %v489, %v488
        %v508 = vpack.c.bf16 %v491, %v490
        %v509 = vpack.c.bf16 %v493, %v492
        %v510 = vld [vmem:[#allocation2 + $0x2] sm:$0xff]
        %v511 = vld [vmem:[#allocation2 + $0xa] sm:$0xff]
        %v512 = vld [vmem:[#allocation2 + $0x1a] sm:$0xff]
        %v513 = vld [vmem:[#allocation2 + $0x22] sm:$0xff]
        %v514 = vld [vmem:[#allocation2 + $0x32] sm:$0xff]
        %v515 = vld [vmem:[#allocation2 + $0x3a] sm:$0xff]
        %v516 = vld [vmem:[#allocation2 + $0x4a] sm:$0xff]
        %v517 = vld [vmem:[#allocation2 + $0x52] sm:$0xff]
        %v518 = vld [vmem:[#allocation2 + $0x62] sm:$0xff]
        %v519 = vld [vmem:[#allocation2 + $0x6a] sm:$0xff]
        %v520 = vld [vmem:[#allocation2 + $0x7a] sm:$0xff]
        %v521 = vld [vmem:[#allocation2 + $0x82] sm:$0xff]
        %v522 = vld [vmem:[#allocation2 + $0x92] sm:$0xff]
        %v523 = vld [vmem:[#allocation2 + $0x9a] sm:$0xff]
        %v524 = vld [vmem:[#allocation2 + $0xaa] sm:$0xff]
        %v525 = vld [vmem:[#allocation2 + $0xb2] sm:$0xff]
        %v526 = vld [vmem:[#allocation2 + $0xc2] sm:$0xff]
        %v527 = vld [vmem:[#allocation2 + $0xca] sm:$0xff]
        %v528 = vld [vmem:[#allocation2 + $0xda] sm:$0xff]
        %v529 = vld [vmem:[#allocation2 + $0xe2] sm:$0xff]
        %v530 = vld [vmem:[#allocation2 + $0xf2] sm:$0xff]
        %v531 = vld [vmem:[#allocation2 + $0xfa] sm:$0xff]
        %v532 = vld [vmem:[#allocation2 + $0x10a] sm:$0xff]
        %v533 = vld [vmem:[#allocation2 + $0x112] sm:$0xff]
        %v534 = vld [vmem:[#allocation2 + $0x122] sm:$0xff]
        %v535 = vld [vmem:[#allocation2 + $0x12a] sm:$0xff]
        %v536 = vld [vmem:[#allocation2 + $0x13a] sm:$0xff]
        %v537 = vld [vmem:[#allocation2 + $0x142] sm:$0xff]
        %v538 = vld [vmem:[#allocation2 + $0x152] sm:$0xff]
        %v539 = vld [vmem:[#allocation2 + $0x15a] sm:$0xff]
        %v540 = vld [vmem:[#allocation2 + $0x16a] sm:$0xff]
        %v541 = vld [vmem:[#allocation2 + $0x172] sm:$0xff]
        %v542 = vpack.c.bf16 %v511, %v510
        %v543 = vpack.c.bf16 %v513, %v512
        %v544 = vpack.c.bf16 %v515, %v514
        %v545 = vpack.c.bf16 %v517, %v516
        %v546 = vpack.c.bf16 %v519, %v518
        %v547 = vpack.c.bf16 %v521, %v520
        %v548 = vpack.c.bf16 %v523, %v522
        %v549 = vpack.c.bf16 %v525, %v524
        %v550 = vpack.c.bf16 %v527, %v526
        %v551 = vpack.c.bf16 %v529, %v528
        %v552 = vpack.c.bf16 %v531, %v530
        %v553 = vpack.c.bf16 %v533, %v532
        %v554 = vpack.c.bf16 %v535, %v534
        %v555 = vpack.c.bf16 %v537, %v536
        %v556 = vpack.c.bf16 %v539, %v538
        %v557 = vpack.c.bf16 %v541, %v540
        %s558 = scalar_lea.vmem [#allocation2], 24
        %v559 = vld [vmem:[%s558] sm:$0xff]
        %v560 = vld [vmem:[%s558 + $0x8] sm:$0xff]
        %v561 = vld [vmem:[%s558 + $0x18] sm:$0xff]
        %v562 = vld [vmem:[%s558 + $0x20] sm:$0xff]
        %v563 = vld [vmem:[%s558 + $0x30] sm:$0xff]
        %v564 = vld [vmem:[%s558 + $0x38] sm:$0xff]
        %v565 = vld [vmem:[%s558 + $0x48] sm:$0xff]
        %v566 = vld [vmem:[%s558 + $0x50] sm:$0xff]
        %v567 = vld [vmem:[%s558 + $0x60] sm:$0xff]
        %v568 = vld [vmem:[%s558 + $0x68] sm:$0xff]
        %v569 = vld [vmem:[%s558 + $0x78] sm:$0xff]
        %v570 = vld [vmem:[%s558 + $0x80] sm:$0xff]
        %v571 = vld [vmem:[%s558 + $0x90] sm:$0xff]
        %v572 = vld [vmem:[%s558 + $0x98] sm:$0xff]
        %v573 = vld [vmem:[%s558 + $0xa8] sm:$0xff]
        %v574 = vld [vmem:[%s558 + $0xb0] sm:$0xff]
        %v575 = vld [vmem:[%s558 + $0xc0] sm:$0xff]
        %v576 = vld [vmem:[%s558 + $0xc8] sm:$0xff]
        %v577 = vld [vmem:[%s558 + $0xd8] sm:$0xff]
        %v578 = vld [vmem:[%s558 + $0xe0] sm:$0xff]
        %v579 = vld [vmem:[%s558 + $0xf0] sm:$0xff]
        %v580 = vld [vmem:[%s558 + $0xf8] sm:$0xff]
        %v581 = vld [vmem:[%s558 + $0x108] sm:$0xff]
        %v582 = vld [vmem:[%s558 + $0x110] sm:$0xff]
        %v583 = vld [vmem:[%s558 + $0x120] sm:$0xff]
        %v584 = vld [vmem:[%s558 + $0x128] sm:$0xff]
        %v585 = vld [vmem:[%s558 + $0x138] sm:$0xff]
        %v586 = vld [vmem:[%s558 + $0x140] sm:$0xff]
        %v587 = vld [vmem:[%s558 + $0x150] sm:$0xff]
        %v588 = vld [vmem:[%s558 + $0x158] sm:$0xff]
        %v589 = vld [vmem:[%s558 + $0x168] sm:$0xff]
        %v590 = vld [vmem:[%s558 + $0x170] sm:$0xff]
        %v591 = vpack.c.bf16 %v560, %v559
        %v592 = vpack.c.bf16 %v562, %v561
        %v593 = vpack.c.bf16 %v564, %v563
        %v594 = vpack.c.bf16 %v566, %v565
        %v595 = vpack.c.bf16 %v568, %v567
        %v596 = vpack.c.bf16 %v570, %v569
        %v597 = vpack.c.bf16 %v572, %v571
        %v598 = vpack.c.bf16 %v574, %v573
        %v599 = vpack.c.bf16 %v576, %v575
        %v600 = vpack.c.bf16 %v578, %v577
        %v601 = vpack.c.bf16 %v580, %v579
        %v602 = vpack.c.bf16 %v582, %v581
        %v603 = vpack.c.bf16 %v584, %v583
        %v604 = vpack.c.bf16 %v586, %v585
        %v605 = vpack.c.bf16 %v588, %v587
        %v606 = vpack.c.bf16 %v590, %v589
        %v607 = vld [vmem:[%s558 + $0x1] sm:$0xff]
        %v608 = vld [vmem:[%s558 + $0x9] sm:$0xff]
        %v609 = vld [vmem:[%s558 + $0x19] sm:$0xff]
        %v610 = vld [vmem:[%s558 + $0x21] sm:$0xff]
        %v611 = vld [vmem:[%s558 + $0x31] sm:$0xff]
        %v612 = vld [vmem:[%s558 + $0x39] sm:$0xff]
        %v613 = vld [vmem:[%s558 + $0x49] sm:$0xff]
        %v614 = vld [vmem:[%s558 + $0x51] sm:$0xff]
        %v615 = vld [vmem:[%s558 + $0x61] sm:$0xff]
        %v616 = vld [vmem:[%s558 + $0x69] sm:$0xff]
        %v617 = vld [vmem:[%s558 + $0x79] sm:$0xff]
        %v618 = vld [vmem:[%s558 + $0x81] sm:$0xff]
        %v619 = vld [vmem:[%s558 + $0x91] sm:$0xff]
        %v620 = vld [vmem:[%s558 + $0x99] sm:$0xff]
        %v621 = vld [vmem:[%s558 + $0xa9] sm:$0xff]
        %v622 = vld [vmem:[%s558 + $0xb1] sm:$0xff]
        %v623 = vld [vmem:[%s558 + $0xc1] sm:$0xff]
        %v624 = vld [vmem:[%s558 + $0xc9] sm:$0xff]
        %v625 = vld [vmem:[%s558 + $0xd9] sm:$0xff]
        %v626 = vld [vmem:[%s558 + $0xe1] sm:$0xff]
        %v627 = vld [vmem:[%s558 + $0xf1] sm:$0xff]
        %v628 = vld [vmem:[%s558 + $0xf9] sm:$0xff]
        %v629 = vld [vmem:[%s558 + $0x109] sm:$0xff]
        %v630 = vld [vmem:[%s558 + $0x111] sm:$0xff]
        %v631 = vld [vmem:[%s558 + $0x121] sm:$0xff]
        %v632 = vld [vmem:[%s558 + $0x129] sm:$0xff]
        %v633 = vld [vmem:[%s558 + $0x139] sm:$0xff]
        %v634 = vld [vmem:[%s558 + $0x141] sm:$0xff]
        %v635 = vld [vmem:[%s558 + $0x151] sm:$0xff]
        %v636 = vld [vmem:[%s558 + $0x159] sm:$0xff]
        %v637 = vld [vmem:[%s558 + $0x169] sm:$0xff]
        %v638 = vld [vmem:[%s558 + $0x171] sm:$0xff]
        %v639 = vpack.c.bf16 %v608, %v607
        %v640 = vpack.c.bf16 %v610, %v609
        %v641 = vpack.c.bf16 %v612, %v611
        %v642 = vpack.c.bf16 %v614, %v613
        %v643 = vpack.c.bf16 %v616, %v615
        %v644 = vpack.c.bf16 %v618, %v617
        %v645 = vpack.c.bf16 %v620, %v619
        %v646 = vpack.c.bf16 %v622, %v621
        %v647 = vpack.c.bf16 %v624, %v623
        %v648 = vpack.c.bf16 %v626, %v625
        %v649 = vpack.c.bf16 %v628, %v627
        %v650 = vpack.c.bf16 %v630, %v629
        %v651 = vpack.c.bf16 %v632, %v631
        %v652 = vpack.c.bf16 %v634, %v633
        %v653 = vpack.c.bf16 %v636, %v635
        %v654 = vpack.c.bf16 %v638, %v637
        %v655 = vld [vmem:[%s558 + $0x2] sm:$0xff]
        %v656 = vld [vmem:[%s558 + $0xa] sm:$0xff]
        %v657 = vld [vmem:[%s558 + $0x1a] sm:$0xff]
        %v658 = vld [vmem:[%s558 + $0x22] sm:$0xff]
        %v659 = vld [vmem:[%s558 + $0x32] sm:$0xff]
        %v660 = vld [vmem:[%s558 + $0x3a] sm:$0xff]
        %v661 = vld [vmem:[%s558 + $0x4a] sm:$0xff]
        %v662 = vld [vmem:[%s558 + $0x52] sm:$0xff]
        %v663 = vld [vmem:[%s558 + $0x62] sm:$0xff]
        %v664 = vld [vmem:[%s558 + $0x6a] sm:$0xff]
        %v665 = vld [vmem:[%s558 + $0x7a] sm:$0xff]
        %v666 = vld [vmem:[%s558 + $0x82] sm:$0xff]
        %v667 = vld [vmem:[%s558 + $0x92] sm:$0xff]
        %v668 = vld [vmem:[%s558 + $0x9a] sm:$0xff]
        %v669 = vld [vmem:[%s558 + $0xaa] sm:$0xff]
        %v670 = vld [vmem:[%s558 + $0xb2] sm:$0xff]
        %v671 = vld [vmem:[%s558 + $0xc2] sm:$0xff]
        %v672 = vld [vmem:[%s558 + $0xca] sm:$0xff]
        %v673 = vld [vmem:[%s558 + $0xda] sm:$0xff]
        %v674 = vld [vmem:[%s558 + $0xe2] sm:$0xff]
        %v675 = vld [vmem:[%s558 + $0xf2] sm:$0xff]
        %v676 = vld [vmem:[%s558 + $0xfa] sm:$0xff]
        %v677 = vld [vmem:[%s558 + $0x10a] sm:$0xff]
        %v678 = vld [vmem:[%s558 + $0x112] sm:$0xff]
        %v679 = vld [vmem:[%s558 + $0x122] sm:$0xff]
        %v680 = vld [vmem:[%s558 + $0x12a] sm:$0xff]
        %v681 = vld [vmem:[%s558 + $0x13a] sm:$0xff]
        %v682 = vld [vmem:[%s558 + $0x142] sm:$0xff]
        %v683 = vld [vmem:[%s558 + $0x152] sm:$0xff]
        %v684 = vld [vmem:[%s558 + $0x15a] sm:$0xff]
        %v685 = vld [vmem:[%s558 + $0x16a] sm:$0xff]
        %v686 = vld [vmem:[%s558 + $0x172] sm:$0xff]
        %v687 = vpack.c.bf16 %v656, %v655
        %v688 = vpack.c.bf16 %v658, %v657
        %v689 = vpack.c.bf16 %v660, %v659
        %v690 = vpack.c.bf16 %v662, %v661
        %v691 = vpack.c.bf16 %v664, %v663
        %v692 = vpack.c.bf16 %v666, %v665
        %v693 = vpack.c.bf16 %v668, %v667
        %v694 = vpack.c.bf16 %v670, %v669
        %v695 = vpack.c.bf16 %v672, %v671
        %v696 = vpack.c.bf16 %v674, %v673
        %v697 = vpack.c.bf16 %v676, %v675
        %v698 = vpack.c.bf16 %v678, %v677
        %v699 = vpack.c.bf16 %v680, %v679
        %v700 = vpack.c.bf16 %v682, %v681
        %v701 = vpack.c.bf16 %v684, %v683
        %v702 = vpack.c.bf16 %v686, %v685
        %s703 = scalar_lea.vmem [#allocation2], 48
        %v704 = vld [vmem:[%s703] sm:$0xff]
        %v705 = vld [vmem:[%s703 + $0x8] sm:$0xff]
        %v706 = vld [vmem:[%s703 + $0x18] sm:$0xff]
        %v707 = vld [vmem:[%s703 + $0x20] sm:$0xff]
        %v708 = vld [vmem:[%s703 + $0x30] sm:$0xff]
        %v709 = vld [vmem:[%s703 + $0x38] sm:$0xff]
        %v710 = vld [vmem:[%s703 + $0x48] sm:$0xff]
        %v711 = vld [vmem:[%s703 + $0x50] sm:$0xff]
        %v712 = vld [vmem:[%s703 + $0x60] sm:$0xff]
        %v713 = vld [vmem:[%s703 + $0x68] sm:$0xff]
        %v714 = vld [vmem:[%s703 + $0x78] sm:$0xff]
        %v715 = vld [vmem:[%s703 + $0x80] sm:$0xff]
        %v716 = vld [vmem:[%s703 + $0x90] sm:$0xff]
        %v717 = vld [vmem:[%s703 + $0x98] sm:$0xff]
        %v718 = vld [vmem:[%s703 + $0xa8] sm:$0xff]
        %v719 = vld [vmem:[%s703 + $0xb0] sm:$0xff]
        %v720 = vld [vmem:[%s703 + $0xc0] sm:$0xff]
        %v721 = vld [vmem:[%s703 + $0xc8] sm:$0xff]
        %v722 = vld [vmem:[%s703 + $0xd8] sm:$0xff]
        %v723 = vld [vmem:[%s703 + $0xe0] sm:$0xff]
        %v724 = vld [vmem:[%s703 + $0xf0] sm:$0xff]
        %v725 = vld [vmem:[%s703 + $0xf8] sm:$0xff]
        %v726 = vld [vmem:[%s703 + $0x108] sm:$0xff]
        %v727 = vld [vmem:[%s703 + $0x110] sm:$0xff]
        %v728 = vld [vmem:[%s703 + $0x120] sm:$0xff]
        %v729 = vld [vmem:[%s703 + $0x128] sm:$0xff]
        %v730 = vld [vmem:[%s703 + $0x138] sm:$0xff]
        %v731 = vld [vmem:[%s703 + $0x140] sm:$0xff]
        %v732 = vld [vmem:[%s703 + $0x150] sm:$0xff]
        %v733 = vld [vmem:[%s703 + $0x158] sm:$0xff]
        %v734 = vld [vmem:[%s703 + $0x168] sm:$0xff]
        %v735 = vld [vmem:[%s703 + $0x170] sm:$0xff]
        %v736 = vpack.c.bf16 %v705, %v704
        %v737 = vpack.c.bf16 %v707, %v706
        %v738 = vpack.c.bf16 %v709, %v708
        %v739 = vpack.c.bf16 %v711, %v710
        %v740 = vpack.c.bf16 %v713, %v712
        %v741 = vpack.c.bf16 %v715, %v714
        %v742 = vpack.c.bf16 %v717, %v716
        %v743 = vpack.c.bf16 %v719, %v718
        %v744 = vpack.c.bf16 %v721, %v720
        %v745 = vpack.c.bf16 %v723, %v722
        %v746 = vpack.c.bf16 %v725, %v724
        %v747 = vpack.c.bf16 %v727, %v726
        %v748 = vpack.c.bf16 %v729, %v728
        %v749 = vpack.c.bf16 %v731, %v730
        %v750 = vpack.c.bf16 %v733, %v732
        %v751 = vpack.c.bf16 %v735, %v734
        %v752 = vld [vmem:[%s703 + $0x1] sm:$0xff]
        %v753 = vld [vmem:[%s703 + $0x9] sm:$0xff]
        %v754 = vld [vmem:[%s703 + $0x19] sm:$0xff]
        %v755 = vld [vmem:[%s703 + $0x21] sm:$0xff]
        %v756 = vld [vmem:[%s703 + $0x31] sm:$0xff]
        %v757 = vld [vmem:[%s703 + $0x39] sm:$0xff]
        %v758 = vld [vmem:[%s703 + $0x49] sm:$0xff]
        %v759 = vld [vmem:[%s703 + $0x51] sm:$0xff]
        %v760 = vld [vmem:[%s703 + $0x61] sm:$0xff]
        %v761 = vld [vmem:[%s703 + $0x69] sm:$0xff]
        %v762 = vld [vmem:[%s703 + $0x79] sm:$0xff]
        %v763 = vld [vmem:[%s703 + $0x81] sm:$0xff]
        %v764 = vld [vmem:[%s703 + $0x91] sm:$0xff]
        %v765 = vld [vmem:[%s703 + $0x99] sm:$0xff]
        %v766 = vld [vmem:[%s703 + $0xa9] sm:$0xff]
        %v767 = vld [vmem:[%s703 + $0xb1] sm:$0xff]
        %v768 = vld [vmem:[%s703 + $0xc1] sm:$0xff]
        %v769 = vld [vmem:[%s703 + $0xc9] sm:$0xff]
        %v770 = vld [vmem:[%s703 + $0xd9] sm:$0xff]
        %v771 = vld [vmem:[%s703 + $0xe1] sm:$0xff]
        %v772 = vld [vmem:[%s703 + $0xf1] sm:$0xff]
        %v773 = vld [vmem:[%s703 + $0xf9] sm:$0xff]
        %v774 = vld [vmem:[%s703 + $0x109] sm:$0xff]
        %v775 = vld [vmem:[%s703 + $0x111] sm:$0xff]
        %v776 = vld [vmem:[%s703 + $0x121] sm:$0xff]
        %v777 = vld [vmem:[%s703 + $0x129] sm:$0xff]
        %v778 = vld [vmem:[%s703 + $0x139] sm:$0xff]
        %v779 = vld [vmem:[%s703 + $0x141] sm:$0xff]
        %v780 = vld [vmem:[%s703 + $0x151] sm:$0xff]
        %v781 = vld [vmem:[%s703 + $0x159] sm:$0xff]
        %v782 = vld [vmem:[%s703 + $0x169] sm:$0xff]
        %v783 = vld [vmem:[%s703 + $0x171] sm:$0xff]
        %v784 = vpack.c.bf16 %v753, %v752
        %v785 = vpack.c.bf16 %v755, %v754
        %v786 = vpack.c.bf16 %v757, %v756
        %v787 = vpack.c.bf16 %v759, %v758
        %v788 = vpack.c.bf16 %v761, %v760
        %v789 = vpack.c.bf16 %v763, %v762
        %v790 = vpack.c.bf16 %v765, %v764
        %v791 = vpack.c.bf16 %v767, %v766
        %v792 = vpack.c.bf16 %v769, %v768
        %v793 = vpack.c.bf16 %v771, %v770
        %v794 = vpack.c.bf16 %v773, %v772
        %v795 = vpack.c.bf16 %v775, %v774
        %v796 = vpack.c.bf16 %v777, %v776
        %v797 = vpack.c.bf16 %v779, %v778
        %v798 = vpack.c.bf16 %v781, %v780
        %v799 = vpack.c.bf16 %v783, %v782
        %v800 = vld [vmem:[%s703 + $0x2] sm:$0xff]
        %v801 = vld [vmem:[%s703 + $0xa] sm:$0xff]
        %v802 = vld [vmem:[%s703 + $0x1a] sm:$0xff]
        %v803 = vld [vmem:[%s703 + $0x22] sm:$0xff]
        %v804 = vld [vmem:[%s703 + $0x32] sm:$0xff]
        %v805 = vld [vmem:[%s703 + $0x3a] sm:$0xff]
        %v806 = vld [vmem:[%s703 + $0x4a] sm:$0xff]
        %v807 = vld [vmem:[%s703 + $0x52] sm:$0xff]
        %v808 = vld [vmem:[%s703 + $0x62] sm:$0xff]
        %v809 = vld [vmem:[%s703 + $0x6a] sm:$0xff]
        %v810 = vld [vmem:[%s703 + $0x7a] sm:$0xff]
        %v811 = vld [vmem:[%s703 + $0x82] sm:$0xff]
        %v812 = vld [vmem:[%s703 + $0x92] sm:$0xff]
        %v813 = vld [vmem:[%s703 + $0x9a] sm:$0xff]
        %v814 = vld [vmem:[%s703 + $0xaa] sm:$0xff]
        %v815 = vld [vmem:[%s703 + $0xb2] sm:$0xff]
        %v816 = vld [vmem:[%s703 + $0xc2] sm:$0xff]
        %v817 = vld [vmem:[%s703 + $0xca] sm:$0xff]
        %v818 = vld [vmem:[%s703 + $0xda] sm:$0xff]
        %v819 = vld [vmem:[%s703 + $0xe2] sm:$0xff]
        %v820 = vld [vmem:[%s703 + $0xf2] sm:$0xff]
        %v821 = vld [vmem:[%s703 + $0xfa] sm:$0xff]
        %v822 = vld [vmem:[%s703 + $0x10a] sm:$0xff]
        %v823 = vld [vmem:[%s703 + $0x112] sm:$0xff]
        %v824 = vld [vmem:[%s703 + $0x122] sm:$0xff]
        %v825 = vld [vmem:[%s703 + $0x12a] sm:$0xff]
        %v826 = vld [vmem:[%s703 + $0x13a] sm:$0xff]
        %v827 = vld [vmem:[%s703 + $0x142] sm:$0xff]
        %v828 = vld [vmem:[%s703 + $0x152] sm:$0xff]
        %v829 = vld [vmem:[%s703 + $0x15a] sm:$0xff]
        %v830 = vld [vmem:[%s703 + $0x16a] sm:$0xff]
        %v831 = vld [vmem:[%s703 + $0x172] sm:$0xff]
        %v832 = vpack.c.bf16 %v801, %v800
        %v833 = vpack.c.bf16 %v803, %v802
        %v834 = vpack.c.bf16 %v805, %v804
        %v835 = vpack.c.bf16 %v807, %v806
        %v836 = vpack.c.bf16 %v809, %v808
        %v837 = vpack.c.bf16 %v811, %v810
        %v838 = vpack.c.bf16 %v813, %v812
        %v839 = vpack.c.bf16 %v815, %v814
        %v840 = vpack.c.bf16 %v817, %v816
        %v841 = vpack.c.bf16 %v819, %v818
        %v842 = vpack.c.bf16 %v821, %v820
        %v843 = vpack.c.bf16 %v823, %v822
        %v844 = vpack.c.bf16 %v825, %v824
        %v845 = vpack.c.bf16 %v827, %v826
        %v846 = vpack.c.bf16 %v829, %v828
        %v847 = vpack.c.bf16 %v831, %v830
        %864 = vrot.lane.b32.xlu0 %v494, 32
        %v865 = vpop.permute.xlu0 %864
        %866 = vrot.lane.b32.xlu0 %v495, 32
        %v867 = vpop.permute.xlu0 %866
        %868 = vrot.lane.b32.xlu0 %v496, 32
        %v869 = vpop.permute.xlu0 %868
        %870 = vrot.lane.b32.xlu0 %v497, 32
        %v871 = vpop.permute.xlu0 %870
        %872 = vrot.lane.b32.xlu0 %v498, 32
        %v873 = vpop.permute.xlu0 %872
        %874 = vrot.lane.b32.xlu0 %v499, 32
        %v875 = vpop.permute.xlu0 %874
        %876 = vrot.lane.b32.xlu0 %v500, 32
        %v877 = vpop.permute.xlu0 %876
        %878 = vrot.lane.b32.xlu0 %v501, 32
        %v879 = vpop.permute.xlu0 %878
        %880 = vrot.lane.b32.xlu0 %v502, 32
        %v881 = vpop.permute.xlu0 %880
        %882 = vrot.lane.b32.xlu0 %v503, 32
        %v883 = vpop.permute.xlu0 %882
        %884 = vrot.lane.b32.xlu0 %v504, 32
        %v885 = vpop.permute.xlu0 %884
        %886 = vrot.lane.b32.xlu0 %v505, 32
        %v887 = vpop.permute.xlu0 %886
        %888 = vrot.lane.b32.xlu0 %v506, 32
        %v889 = vpop.permute.xlu0 %888
        %890 = vrot.lane.b32.xlu0 %v507, 32
        %v891 = vpop.permute.xlu0 %890
        %892 = vrot.lane.b32.xlu0 %v508, 32
        %v893 = vpop.permute.xlu0 %892
        %894 = vrot.lane.b32.xlu0 %v509, 32
        %v895 = vpop.permute.xlu0 %894
        %912 = vrot.lane.b32.xlu0 %v542, 64
        %v913 = vpop.permute.xlu0 %912
        %914 = vrot.lane.b32.xlu0 %v543, 64
        %v915 = vpop.permute.xlu0 %914
        %916 = vrot.lane.b32.xlu0 %v544, 64
        %v917 = vpop.permute.xlu0 %916
        %918 = vrot.lane.b32.xlu0 %v545, 64
        %v919 = vpop.permute.xlu0 %918
        %920 = vrot.lane.b32.xlu0 %v546, 64
        %v921 = vpop.permute.xlu0 %920
        %922 = vrot.lane.b32.xlu0 %v547, 64
        %v923 = vpop.permute.xlu0 %922
        %924 = vrot.lane.b32.xlu0 %v548, 64
        %v925 = vpop.permute.xlu0 %924
        %926 = vrot.lane.b32.xlu0 %v549, 64
        %v927 = vpop.permute.xlu0 %926
        %928 = vrot.lane.b32.xlu0 %v550, 64
        %v929 = vpop.permute.xlu0 %928
        %930 = vrot.lane.b32.xlu0 %v551, 64
        %v931 = vpop.permute.xlu0 %930
        %932 = vrot.lane.b32.xlu0 %v552, 64
        %v933 = vpop.permute.xlu0 %932
        %934 = vrot.lane.b32.xlu0 %v553, 64
        %v935 = vpop.permute.xlu0 %934
        %936 = vrot.lane.b32.xlu0 %v554, 64
        %v937 = vpop.permute.xlu0 %936
        %938 = vrot.lane.b32.xlu0 %v555, 64
        %v939 = vpop.permute.xlu0 %938
        %940 = vrot.lane.b32.xlu0 %v556, 64
        %v941 = vpop.permute.xlu0 %940
        %942 = vrot.lane.b32.xlu0 %v557, 64
        %v943 = vpop.permute.xlu0 %942
        %960 = vrot.lane.b32.xlu0 %v591, 96
        %v961 = vpop.permute.xlu0 %960
        %962 = vrot.lane.b32.xlu0 %v592, 96
        %v963 = vpop.permute.xlu0 %962
        %964 = vrot.lane.b32.xlu0 %v593, 96
        %v965 = vpop.permute.xlu0 %964
        %966 = vrot.lane.b32.xlu0 %v594, 96
        %v967 = vpop.permute.xlu0 %966
        %968 = vrot.lane.b32.xlu0 %v595, 96
        %v969 = vpop.permute.xlu0 %968
        %970 = vrot.lane.b32.xlu0 %v596, 96
        %v971 = vpop.permute.xlu0 %970
        %972 = vrot.lane.b32.xlu0 %v597, 96
        %v973 = vpop.permute.xlu0 %972
        %974 = vrot.lane.b32.xlu0 %v598, 96
        %v975 = vpop.permute.xlu0 %974
        %976 = vrot.lane.b32.xlu0 %v599, 96
        %v977 = vpop.permute.xlu0 %976
        %978 = vrot.lane.b32.xlu0 %v600, 96
        %v979 = vpop.permute.xlu0 %978
        %980 = vrot.lane.b32.xlu0 %v601, 96
        %v981 = vpop.permute.xlu0 %980
        %982 = vrot.lane.b32.xlu0 %v602, 96
        %v983 = vpop.permute.xlu0 %982
        %984 = vrot.lane.b32.xlu0 %v603, 96
        %v985 = vpop.permute.xlu0 %984
        %986 = vrot.lane.b32.xlu0 %v604, 96
        %v987 = vpop.permute.xlu0 %986
        %988 = vrot.lane.b32.xlu0 %v605, 96
        %v989 = vpop.permute.xlu0 %988
        %990 = vrot.lane.b32.xlu0 %v606, 96
        %v991 = vpop.permute.xlu0 %990
        %1008 = vrot.lane.b32.xlu0 %v687, 32
        %v1009 = vpop.permute.xlu0 %1008
        %1010 = vrot.lane.b32.xlu0 %v688, 32
        %v1011 = vpop.permute.xlu0 %1010
        %1012 = vrot.lane.b32.xlu0 %v689, 32
        %v1013 = vpop.permute.xlu0 %1012
        %1014 = vrot.lane.b32.xlu0 %v690, 32
        %v1015 = vpop.permute.xlu0 %1014
        %1016 = vrot.lane.b32.xlu0 %v691, 32
        %v1017 = vpop.permute.xlu0 %1016
        %1018 = vrot.lane.b32.xlu0 %v692, 32
        %v1019 = vpop.permute.xlu0 %1018
        %1020 = vrot.lane.b32.xlu0 %v693, 32
        %v1021 = vpop.permute.xlu0 %1020
        %1022 = vrot.lane.b32.xlu0 %v694, 32
        %v1023 = vpop.permute.xlu0 %1022
        %1024 = vrot.lane.b32.xlu0 %v695, 32
        %v1025 = vpop.permute.xlu0 %1024
        %1026 = vrot.lane.b32.xlu0 %v696, 32
        %v1027 = vpop.permute.xlu0 %1026
        %1028 = vrot.lane.b32.xlu0 %v697, 32
        %v1029 = vpop.permute.xlu0 %1028
        %1030 = vrot.lane.b32.xlu0 %v698, 32
        %v1031 = vpop.permute.xlu0 %1030
        %1032 = vrot.lane.b32.xlu0 %v699, 32
        %v1033 = vpop.permute.xlu0 %1032
        %1034 = vrot.lane.b32.xlu0 %v700, 32
        %v1035 = vpop.permute.xlu0 %1034
        %1036 = vrot.lane.b32.xlu0 %v701, 32
        %v1037 = vpop.permute.xlu0 %1036
        %1038 = vrot.lane.b32.xlu0 %v702, 32
        %v1039 = vpop.permute.xlu0 %1038
        %1056 = vrot.lane.b32.xlu0 %v736, 64
        %v1057 = vpop.permute.xlu0 %1056
        %1058 = vrot.lane.b32.xlu0 %v737, 64
        %v1059 = vpop.permute.xlu0 %1058
        %1060 = vrot.lane.b32.xlu0 %v738, 64
        %v1061 = vpop.permute.xlu0 %1060
        %1062 = vrot.lane.b32.xlu0 %v739, 64
        %v1063 = vpop.permute.xlu0 %1062
        %1064 = vrot.lane.b32.xlu0 %v740, 64
        %v1065 = vpop.permute.xlu0 %1064
        %1066 = vrot.lane.b32.xlu0 %v741, 64
        %v1067 = vpop.permute.xlu0 %1066
        %1068 = vrot.lane.b32.xlu0 %v742, 64
        %v1069 = vpop.permute.xlu0 %1068
        %1070 = vrot.lane.b32.xlu0 %v743, 64
        %v1071 = vpop.permute.xlu0 %1070
        %1072 = vrot.lane.b32.xlu0 %v744, 64
        %v1073 = vpop.permute.xlu0 %1072
        %1074 = vrot.lane.b32.xlu0 %v745, 64
        %v1075 = vpop.permute.xlu0 %1074
        %1076 = vrot.lane.b32.xlu0 %v746, 64
        %v1077 = vpop.permute.xlu0 %1076
        %1078 = vrot.lane.b32.xlu0 %v747, 64
        %v1079 = vpop.permute.xlu0 %1078
        %1080 = vrot.lane.b32.xlu0 %v748, 64
        %v1081 = vpop.permute.xlu0 %1080
        %1082 = vrot.lane.b32.xlu0 %v749, 64
        %v1083 = vpop.permute.xlu0 %1082
        %1084 = vrot.lane.b32.xlu0 %v750, 64
        %v1085 = vpop.permute.xlu0 %1084
        %1086 = vrot.lane.b32.xlu0 %v751, 64
        %v1087 = vpop.permute.xlu0 %1086
        %1104 = vrot.lane.b32.xlu0 %v784, 96
        %v1105 = vpop.permute.xlu0 %1104
        %1106 = vrot.lane.b32.xlu0 %v785, 96
        %v1107 = vpop.permute.xlu0 %1106
        %1108 = vrot.lane.b32.xlu0 %v786, 96
        %v1109 = vpop.permute.xlu0 %1108
        %1110 = vrot.lane.b32.xlu0 %v787, 96
        %v1111 = vpop.permute.xlu0 %1110
        %1112 = vrot.lane.b32.xlu0 %v788, 96
        %v1113 = vpop.permute.xlu0 %1112
        %1114 = vrot.lane.b32.xlu0 %v789, 96
        %v1115 = vpop.permute.xlu0 %1114
        %1116 = vrot.lane.b32.xlu0 %v790, 96
        %v1117 = vpop.permute.xlu0 %1116
        %1118 = vrot.lane.b32.xlu0 %v791, 96
        %v1119 = vpop.permute.xlu0 %1118
        %1120 = vrot.lane.b32.xlu0 %v792, 96
        %v1121 = vpop.permute.xlu0 %1120
        %1122 = vrot.lane.b32.xlu0 %v793, 96
        %v1123 = vpop.permute.xlu0 %1122
        %1124 = vrot.lane.b32.xlu0 %v794, 96
        %v1125 = vpop.permute.xlu0 %1124
        %1126 = vrot.lane.b32.xlu0 %v795, 96
        %v1127 = vpop.permute.xlu0 %1126
        %1128 = vrot.lane.b32.xlu0 %v796, 96
        %v1129 = vpop.permute.xlu0 %1128
        %1130 = vrot.lane.b32.xlu0 %v797, 96
        %v1131 = vpop.permute.xlu0 %1130
        %1132 = vrot.lane.b32.xlu0 %v798, 96
        %v1133 = vpop.permute.xlu0 %1132
        %1134 = vrot.lane.b32.xlu0 %v799, 96
        %v1135 = vpop.permute.xlu0 %1134
        %vm1136 = vcmask 261120
        %v1139 = vsel %vm1136, %v446, %v865
        %v1142 = vsel %vm1136, %v447, %v867
        %v1145 = vsel %vm1136, %v448, %v869
        %v1148 = vsel %vm1136, %v449, %v871
        %v1151 = vsel %vm1136, %v450, %v873
        %v1154 = vsel %vm1136, %v451, %v875
        %v1157 = vsel %vm1136, %v452, %v877
        %v1160 = vsel %vm1136, %v453, %v879
        %v1163 = vsel %vm1136, %v454, %v881
        %v1166 = vsel %vm1136, %v455, %v883
        %v1169 = vsel %vm1136, %v456, %v885
        %v1172 = vsel %vm1136, %v457, %v887
        %v1175 = vsel %vm1136, %v458, %v889
        %v1178 = vsel %vm1136, %v459, %v891
        %v1181 = vsel %vm1136, %v460, %v893
        %v1184 = vsel %vm1136, %v461, %v895
        %vm1185 = vcmask 523264
        %v1187 = vsel %vm1185, %v1139, %v913
        %v1189 = vsel %vm1185, %v1142, %v915
        %v1191 = vsel %vm1185, %v1145, %v917
        %v1193 = vsel %vm1185, %v1148, %v919
        %v1195 = vsel %vm1185, %v1151, %v921
        %v1197 = vsel %vm1185, %v1154, %v923
        %v1199 = vsel %vm1185, %v1157, %v925
        %v1201 = vsel %vm1185, %v1160, %v927
        %v1203 = vsel %vm1185, %v1163, %v929
        %v1205 = vsel %vm1185, %v1166, %v931
        %v1207 = vsel %vm1185, %v1169, %v933
        %v1209 = vsel %vm1185, %v1172, %v935
        %v1211 = vsel %vm1185, %v1175, %v937
        %v1213 = vsel %vm1185, %v1178, %v939
        %v1215 = vsel %vm1185, %v1181, %v941
        %v1217 = vsel %vm1185, %v1184, %v943
        %vm1218 = vcmask 785408
        %v1220 = vsel %vm1218, %v1187, %v961
        %v1223 = vsel %vm1218, %v1189, %v963
        %v1226 = vsel %vm1218, %v1191, %v965
        %v1229 = vsel %vm1218, %v1193, %v967
        %v1232 = vsel %vm1218, %v1195, %v969
        %v1235 = vsel %vm1218, %v1197, %v971
        %v1238 = vsel %vm1218, %v1199, %v973
        %v1241 = vsel %vm1218, %v1201, %v975
        %v1244 = vsel %vm1218, %v1203, %v977
        %v1247 = vsel %vm1218, %v1205, %v979
        %v1250 = vsel %vm1218, %v1207, %v981
        %v1253 = vsel %vm1218, %v1209, %v983
        %v1256 = vsel %vm1218, %v1211, %v985
        %v1259 = vsel %vm1218, %v1213, %v987
        %v1262 = vsel %vm1218, %v1215, %v989
        %v1265 = vsel %vm1218, %v1217, %v991
        %v1269 = vsel %vm1136, %v639, %v1009
        %v1272 = vsel %vm1136, %v640, %v1011
        %v1275 = vsel %vm1136, %v641, %v1013
        %v1278 = vsel %vm1136, %v642, %v1015
        %v1281 = vsel %vm1136, %v643, %v1017
        %v1284 = vsel %vm1136, %v644, %v1019
        %v1287 = vsel %vm1136, %v645, %v1021
        %v1290 = vsel %vm1136, %v646, %v1023
        %v1293 = vsel %vm1136, %v647, %v1025
        %v1296 = vsel %vm1136, %v648, %v1027
        %v1299 = vsel %vm1136, %v649, %v1029
        %v1302 = vsel %vm1136, %v650, %v1031
        %v1305 = vsel %vm1136, %v651, %v1033
        %v1308 = vsel %vm1136, %v652, %v1035
        %v1311 = vsel %vm1136, %v653, %v1037
        %v1314 = vsel %vm1136, %v654, %v1039
        %v1316 = vsel %vm1185, %v1269, %v1057
        %v1318 = vsel %vm1185, %v1272, %v1059
        %v1320 = vsel %vm1185, %v1275, %v1061
        %v1322 = vsel %vm1185, %v1278, %v1063
        %v1324 = vsel %vm1185, %v1281, %v1065
        %v1326 = vsel %vm1185, %v1284, %v1067
        %v1328 = vsel %vm1185, %v1287, %v1069
        %v1330 = vsel %vm1185, %v1290, %v1071
        %v1332 = vsel %vm1185, %v1293, %v1073
        %v1334 = vsel %vm1185, %v1296, %v1075
        %v1336 = vsel %vm1185, %v1299, %v1077
        %v1338 = vsel %vm1185, %v1302, %v1079
        %v1340 = vsel %vm1185, %v1305, %v1081
        %v1342 = vsel %vm1185, %v1308, %v1083
        %v1344 = vsel %vm1185, %v1311, %v1085
        %v1346 = vsel %vm1185, %v1314, %v1087
        %v1348 = vsel %vm1218, %v1316, %v1105
        %v1351 = vsel %vm1218, %v1318, %v1107
        %v1354 = vsel %vm1218, %v1320, %v1109
        %v1357 = vsel %vm1218, %v1322, %v1111
        %v1360 = vsel %vm1218, %v1324, %v1113
        %v1363 = vsel %vm1218, %v1326, %v1115
        %v1366 = vsel %vm1218, %v1328, %v1117
        %v1369 = vsel %vm1218, %v1330, %v1119
        %v1372 = vsel %vm1218, %v1332, %v1121
        %v1375 = vsel %vm1218, %v1334, %v1123
        %v1378 = vsel %vm1218, %v1336, %v1125
        %v1381 = vsel %vm1218, %v1338, %v1127
        %v1384 = vsel %vm1218, %v1340, %v1129
        %v1387 = vsel %vm1218, %v1342, %v1131
        %v1390 = vsel %vm1218, %v1344, %v1133
        %v1393 = vsel %vm1218, %v1346, %v1135
        %v1395 = vld [vmem:[%s249] sm:$0xf]
        %v1396 = vld [vmem:[%s249 + $0x4] sm:$0xf]
        %v1397 = vld [vmem:[%s249 + $0x8] sm:$0xf]
        %v1398 = vld [vmem:[%s249 + $0xc] sm:$0xf]
        %v1399 = vld [vmem:[%s249 + $0x10] sm:$0xf]
        %v1400 = vld [vmem:[%s249 + $0x14] sm:$0xf]
        %v1401 = vld [vmem:[%s249 + $0x18] sm:$0xf]
        %v1402 = vld [vmem:[%s249 + $0x1c] sm:$0xf]
        %v1403 = vld [vmem:[%s249 + $0x20] sm:$0xf]
        %v1404 = vld [vmem:[%s249 + $0x24] sm:$0xf]
        %v1405 = vld [vmem:[%s249 + $0x28] sm:$0xf]
        %v1406 = vld [vmem:[%s249 + $0x2c] sm:$0xf]
        %v1407 = vld [vmem:[%s249 + $0x30] sm:$0xf]
        %v1408 = vld [vmem:[%s249 + $0x34] sm:$0xf]
        %v1409 = vld [vmem:[%s249 + $0x38] sm:$0xf]
        %v1410 = vld [vmem:[%s249 + $0x3c] sm:$0xf]
        %v1411 = vld [vmem:[%s249 + $0x40] sm:$0xf]
        %v1412 = vld [vmem:[%s249 + $0x44] sm:$0xf]
        %v1413 = vld [vmem:[%s249 + $0x48] sm:$0xf]
        %v1414 = vld [vmem:[%s249 + $0x4c] sm:$0xf]
        %v1415 = vld [vmem:[%s249 + $0x50] sm:$0xf]
        %v1416 = vld [vmem:[%s249 + $0x54] sm:$0xf]
        %v1417 = vld [vmem:[%s249 + $0x58] sm:$0xf]
        %v1418 = vld [vmem:[%s249 + $0x5c] sm:$0xf]
        %v1419 = vld [vmem:[%s249 + $0x60] sm:$0xf]
        %v1420 = vld [vmem:[%s249 + $0x64] sm:$0xf]
        %v1421 = vld [vmem:[%s249 + $0x68] sm:$0xf]
        %v1422 = vld [vmem:[%s249 + $0x6c] sm:$0xf]
        %v1423 = vld [vmem:[%s249 + $0x70] sm:$0xf]
        %v1424 = vld [vmem:[%s249 + $0x74] sm:$0xf]
        %v1425 = vld [vmem:[%s249 + $0x78] sm:$0xf]
        %v1426 = vld [vmem:[%s249 + $0x7c] sm:$0xf]
        %v1427 = vld [vmem:[%s249 + $0x80] sm:$0xf]
        %v1428 = vld [vmem:[%s249 + $0x84] sm:$0xf]
        %v1429 = vld [vmem:[%s249 + $0x88] sm:$0xf]
        %v1430 = vld [vmem:[%s249 + $0x8c] sm:$0xf]
        %v1467 = vunpack.c.l.b16 %v1395
        %v1468 = vunpack.c.l.b16 %v1396
        %v1469 = vunpack.c.l.b16 %v1397
        %v1470 = vunpack.c.l.b16 %v1398
        %v1471 = vunpack.c.l.b16 %v1399
        %v1472 = vunpack.c.l.b16 %v1400
        %v1473 = vunpack.c.l.b16 %v1401
        %v1474 = vunpack.c.l.b16 %v1402
        %v1475 = vunpack.c.l.b16 %v1403
        %v1476 = vunpack.c.l.b16 %v1404
        %v1477 = vunpack.c.l.b16 %v1405
        %v1478 = vunpack.c.l.b16 %v1406
        %v1479 = vunpack.c.l.b16 %v1407
        %v1480 = vunpack.c.l.b16 %v1408
        %v1481 = vunpack.c.l.b16 %v1409
        %v1482 = vunpack.c.l.b16 %v1410
        %v1483 = vunpack.c.l.b16 %v1411
        %v1484 = vunpack.c.l.b16 %v1412
        %v1485 = vunpack.c.l.b16 %v1413
        %v1486 = vunpack.c.l.b16 %v1414
        %v1487 = vunpack.c.l.b16 %v1415
        %v1488 = vunpack.c.l.b16 %v1416
        %v1489 = vunpack.c.l.b16 %v1417
        %v1490 = vunpack.c.l.b16 %v1418
        %v1491 = vunpack.c.l.b16 %v1419
        %v1492 = vunpack.c.l.b16 %v1420
        %v1493 = vunpack.c.l.b16 %v1421
        %v1494 = vunpack.c.l.b16 %v1422
        %v1495 = vunpack.c.l.b16 %v1423
        %v1496 = vunpack.c.l.b16 %v1424
        %v1497 = vunpack.c.l.b16 %v1425
        %v1498 = vunpack.c.l.b16 %v1426
        %v1499 = vunpack.c.l.b16 %v1427
        %v1500 = vunpack.c.l.b16 %v1428
        %v1501 = vunpack.c.l.b16 %v1429
        %v1502 = vunpack.c.l.b16 %v1430
        %v1503 = vpack.c.b16 %v1468, %v1467
        %v1504 = vpack.c.b16 %v1470, %v1469
        %v1505 = vpack.c.b16 %v1472, %v1471
        %v1506 = vpack.c.b16 %v1474, %v1473
        %v1507 = vpack.c.b16 %v1476, %v1475
        %v1508 = vpack.c.b16 %v1478, %v1477
        %v1509 = vpack.c.b16 %v1480, %v1479
        %v1510 = vpack.c.b16 %v1482, %v1481
        %v1511 = vpack.c.b16 %v1484, %v1483
        %v1512 = vpack.c.b16 %v1486, %v1485
        %v1513 = vpack.c.b16 %v1488, %v1487
        %v1514 = vpack.c.b16 %v1490, %v1489
        %v1515 = vpack.c.b16 %v1492, %v1491
        %v1516 = vpack.c.b16 %v1494, %v1493
        %v1517 = vpack.c.b16 %v1496, %v1495
        %v1518 = vpack.c.b16 %v1498, %v1497
        %v1519 = vpack.c.b16 %v1500, %v1499
        %v1520 = vpack.c.b16 %v1502, %v1501
        %v1540 = vsel %vm1136, %v832, 0
        %v1543 = vsel %vm1136, %v833, 0
        %v1546 = vsel %vm1136, %v834, 0
        %v1549 = vsel %vm1136, %v835, 0
        %v1552 = vsel %vm1136, %v836, 0
        %v1555 = vsel %vm1136, %v837, 0
        %v1558 = vsel %vm1136, %v838, 0
        %v1561 = vsel %vm1136, %v839, 0
        %v1564 = vsel %vm1136, %v840, 0
        %v1567 = vsel %vm1136, %v841, 0
        %v1570 = vsel %vm1136, %v842, 0
        %v1573 = vsel %vm1136, %v843, 0
        %v1576 = vsel %vm1136, %v844, 0
        %v1579 = vsel %vm1136, %v845, 0
        %v1582 = vsel %vm1136, %v846, 0
        %v1585 = vsel %vm1136, %v847, 0
        %1587 = vmatprep.subr.bf16.mxu0 0
        %1588 = vmatpush1.bf16.msra.mxu0 %v1503
        %1589 = vmatprep.subr.bf16.mxu0 0
        %1590 = vmatpush1.bf16.msra.mxu0 %v1504
        %1591 = vmatprep.subr.bf16.mxu0 0
        %1592 = vmatpush1.bf16.msra.mxu0 %v1505
        %1593 = vmatprep.subr.bf16.mxu0 0
        %1594 = vmatpush1.bf16.msra.mxu0 %v1506
        %1595 = vmatprep.subr.bf16.mxu0 0
        %1596 = vmatpush1.bf16.msra.mxu0 %v1507
        %1597 = vmatprep.subr.bf16.mxu0 0
        %1598 = vmatpush1.bf16.msra.mxu0 %v1508
        %1599 = vmatprep.subr.bf16.mxu0 0
        %1600 = vmatpush1.bf16.msra.mxu0 %v1509
        %1601 = vmatprep.subr.bf16.mxu0 0
        %1602 = vmatpush1.bf16.msra.mxu0 %v1510
        %1603 = vmatprep.subr.bf16.mxu0 0
        %1604 = vmatpush1.bf16.msra.mxu0 %v1511
        %1605 = vmatprep.subr.bf16.mxu0 0
        %1606 = vmatpush1.bf16.msra.mxu0 %v1512
        %1607 = vmatprep.subr.bf16.mxu0 0
        %1608 = vmatpush1.bf16.msra.mxu0 %v1513
        %1609 = vmatprep.subr.bf16.mxu0 0
        %1610 = vmatpush1.bf16.msra.mxu0 %v1514
        %1611 = vmatprep.subr.bf16.mxu0 0
        %1612 = vmatpush1.bf16.msra.mxu0 %v1515
        %1613 = vmatprep.subr.bf16.mxu0 0
        %1614 = vmatpush1.bf16.msra.mxu0 %v1516
        %1615 = vmatprep.subr.bf16.mxu0 0
        %1616 = vmatpush1.bf16.msra.mxu0 %v1517
        %1617 = vmatprep.subr.bf16.mxu0 0
        %1618 = vmatpush1.bf16.msra.mxu0 %v1518
        %1619 = vmatprep.mubr.bf16.mxu0 %v1348
        %1620 = vmatmul.mubr.bf16.gmra.mrb[0].mxu0 %v1220
        %v1621 = vpop.f32.mrb[0].mxu0
        %v1622 = vadd.f32 0.0, %v1621
        %v1623 = vpop.f32.mrb[0].mxu0
        %v1624 = vpop.f32.mrb[0].mxu0
        %v1625 = vadd.f32 0.0, %v1624
        %v1626 = vpop.f32.mrb[0].mxu0
        %1627 = vmatprep.mubr.bf16.mxu0 %v1351
        %1628 = vmatmul.mubr.bf16.gmra.mrb[0].mxu0 %v1223
        %v1629 = vpop.f32.mrb[0].mxu0
        %v1630 = vadd.f32 0.0, %v1629
        %v1631 = vpop.f32.mrb[0].mxu0
        %v1632 = vpop.f32.mrb[0].mxu0
        %v1633 = vadd.f32 0.0, %v1632
        %v1634 = vpop.f32.mrb[0].mxu0
        %1635 = vmatprep.mubr.bf16.mxu0 %v1354
        %1636 = vmatmul.mubr.bf16.gmra.mrb[0].mxu0 %v1226
        %v1637 = vpop.f32.mrb[0].mxu0
        %v1638 = vadd.f32 0.0, %v1637
        %v1639 = vpop.f32.mrb[0].mxu0
        %v1640 = vpop.f32.mrb[0].mxu0
        %v1641 = vadd.f32 0.0, %v1640
        %v1642 = vpop.f32.mrb[0].mxu0
        %1643 = vmatprep.mubr.bf16.mxu0 %v1357
        %1644 = vmatmul.mubr.bf16.gmra.mrb[0].mxu0 %v1229
        %v1645 = vpop.f32.mrb[0].mxu0
        %v1646 = vadd.f32 0.0, %v1645
        %v1647 = vpop.f32.mrb[0].mxu0
        %v1648 = vpop.f32.mrb[0].mxu0
        %v1649 = vadd.f32 0.0, %v1648
        %v1650 = vpop.f32.mrb[0].mxu0
        %1651 = vmatprep.mubr.bf16.mxu0 %v1360
        %1652 = vmatmul.mubr.bf16.gmra.mrb[0].mxu0 %v1232
        %v1653 = vpop.f32.mrb[0].mxu0
        %v1654 = vadd.f32 0.0, %v1653
        %v1655 = vpop.f32.mrb[0].mxu0
        %v1656 = vpop.f32.mrb[0].mxu0
        %v1657 = vadd.f32 0.0, %v1656
        %v1658 = vpop.f32.mrb[0].mxu0
        %1659 = vmatprep.mubr.bf16.mxu0 %v1363
        %1660 = vmatmul.mubr.bf16.gmra.mrb[0].mxu0 %v1235
        %v1661 = vpop.f32.mrb[0].mxu0
        %v1662 = vadd.f32 0.0, %v1661
        %v1663 = vpop.f32.mrb[0].mxu0
        %v1664 = vpop.f32.mrb[0].mxu0
        %v1665 = vadd.f32 0.0, %v1664
        %v1666 = vpop.f32.mrb[0].mxu0
        %1667 = vmatprep.mubr.bf16.mxu0 %v1366
        %1668 = vmatmul.mubr.bf16.gmra.mrb[0].mxu0 %v1238
        %v1669 = vpop.f32.mrb[0].mxu0
        %v1670 = vadd.f32 0.0, %v1669
        %v1671 = vpop.f32.mrb[0].mxu0
        %v1672 = vpop.f32.mrb[0].mxu0
        %v1673 = vadd.f32 0.0, %v1672
        %v1674 = vpop.f32.mrb[0].mxu0
        %1675 = vmatprep.mubr.bf16.mxu0 %v1369
        %1676 = vmatmul.mubr.bf16.gmra.mrb[0].mxu0 %v1241
        %v1677 = vpop.f32.mrb[0].mxu0
        %v1678 = vadd.f32 0.0, %v1677
        %v1679 = vpop.f32.mrb[0].mxu0
        %v1680 = vpop.f32.mrb[0].mxu0
        %v1681 = vadd.f32 0.0, %v1680
        %v1682 = vpop.f32.mrb[0].mxu0
        %1683 = vmatprep.mubr.bf16.mxu0 %v1372
        %1684 = vmatmul.mubr.bf16.gmra.mrb[0].mxu0 %v1244
        %v1685 = vpop.f32.mrb[0].mxu0
        %v1686 = vadd.f32 0.0, %v1685
        %v1687 = vpop.f32.mrb[0].mxu0
        %v1688 = vpop.f32.mrb[0].mxu0
        %v1689 = vadd.f32 0.0, %v1688
        %v1690 = vpop.f32.mrb[0].mxu0
        %1691 = vmatprep.mubr.bf16.mxu0 %v1375
        %1692 = vmatmul.mubr.bf16.gmra.mrb[0].mxu0 %v1247
        %v1693 = vpop.f32.mrb[0].mxu0
        %v1694 = vadd.f32 0.0, %v1693
        %v1695 = vpop.f32.mrb[0].mxu0
        %v1696 = vpop.f32.mrb[0].mxu0
        %v1697 = vadd.f32 0.0, %v1696
        %v1698 = vpop.f32.mrb[0].mxu0
        %1699 = vmatprep.mubr.bf16.mxu0 %v1378
        %1700 = vmatmul.mubr.bf16.gmra.mrb[0].mxu0 %v1250
        %v1701 = vpop.f32.mrb[0].mxu0
        %v1702 = vadd.f32 0.0, %v1701
        %v1703 = vpop.f32.mrb[0].mxu0
        %v1704 = vpop.f32.mrb[0].mxu0
        %v1705 = vadd.f32 0.0, %v1704
        %v1706 = vpop.f32.mrb[0].mxu0
        %1707 = vmatprep.mubr.bf16.mxu0 %v1381
        %1708 = vmatmul.mubr.bf16.gmra.mrb[0].mxu0 %v1253
        %v1709 = vpop.f32.mrb[0].mxu0
        %v1710 = vadd.f32 0.0, %v1709
        %v1711 = vpop.f32.mrb[0].mxu0
        %v1712 = vpop.f32.mrb[0].mxu0
        %v1713 = vadd.f32 0.0, %v1712
        %v1714 = vpop.f32.mrb[0].mxu0
        %1715 = vmatprep.mubr.bf16.mxu0 %v1384
        %1716 = vmatmul.mubr.bf16.gmra.mrb[0].mxu0 %v1256
        %v1717 = vpop.f32.mrb[0].mxu0
        %v1718 = vadd.f32 0.0, %v1717
        %v1719 = vpop.f32.mrb[0].mxu0
        %v1720 = vpop.f32.mrb[0].mxu0
        %v1721 = vadd.f32 0.0, %v1720
        %v1722 = vpop.f32.mrb[0].mxu0
        %1723 = vmatprep.mubr.bf16.mxu0 %v1387
        %1724 = vmatmul.mubr.bf16.gmra.mrb[0].mxu0 %v1259
        %v1725 = vpop.f32.mrb[0].mxu0
        %v1726 = vadd.f32 0.0, %v1725
        %v1727 = vpop.f32.mrb[0].mxu0
        %v1728 = vpop.f32.mrb[0].mxu0
        %v1729 = vadd.f32 0.0, %v1728
        %v1730 = vpop.f32.mrb[0].mxu0
        %1731 = vmatprep.mubr.bf16.mxu0 %v1390
        %1732 = vmatmul.mubr.bf16.gmra.mrb[0].mxu0 %v1262
        %v1733 = vpop.f32.mrb[0].mxu0
        %v1734 = vadd.f32 0.0, %v1733
        %v1735 = vpop.f32.mrb[0].mxu0
        %v1736 = vpop.f32.mrb[0].mxu0
        %v1737 = vadd.f32 0.0, %v1736
        %v1738 = vpop.f32.mrb[0].mxu0
        %1739 = vmatprep.mubr.bf16.mxu0 %v1393
        %1740 = vmatmul.mubr.bf16.gmra.mrb[0].mxu0 %v1265
        %v1741 = vpop.f32.mrb[0].mxu0
        %v1742 = vadd.f32 0.0, %v1741
        %v1743 = vpop.f32.mrb[0].mxu0
        %v1744 = vpop.f32.mrb[0].mxu0
        %v1745 = vadd.f32 0.0, %v1744
        %v1746 = vpop.f32.mrb[0].mxu0
        %1747 = vdwg.mxu0
        %1748 = vmatprep.subr.bf16.mxu0 0
        %1749 = vmatpush1.bf16.msra.mxu0 %v1519
        %1750 = vmatprep.subr.bf16.mxu0 0
        %1751 = vmatpush1.bf16.msra.mxu0 %v1520
        %1752 = vmatprep.subr.bf16.mxu0 0
        %1753 = vmatpush1.bf16.msra.mxu0 0
        %1754 = vmatprep.subr.bf16.mxu0 0
        %1755 = vmatpush1.bf16.msra.mxu0 0
        %1756 = vmatprep.subr.bf16.mxu0 0
        %1757 = vmatpush1.bf16.msra.mxu0 0
        %1758 = vmatprep.subr.bf16.mxu0 0
        %1759 = vmatpush1.bf16.msra.mxu0 0
        %1760 = vmatprep.subr.bf16.mxu0 0
        %1761 = vmatpush1.bf16.msra.mxu0 0
        %1762 = vmatprep.subr.bf16.mxu0 0
        %1763 = vmatpush1.bf16.msra.mxu0 0
        %1764 = vmatprep.subr.bf16.mxu0 0
        %1765 = vmatpush1.bf16.msra.mxu0 0
        %1766 = vmatprep.subr.bf16.mxu0 0
        %1767 = vmatpush1.bf16.msra.mxu0 0
        %1768 = vmatprep.subr.bf16.mxu0 0
        %1769 = vmatpush1.bf16.msra.mxu0 0
        %1770 = vmatprep.subr.bf16.mxu0 0
        %1771 = vmatpush1.bf16.msra.mxu0 0
        %1772 = vmatprep.subr.bf16.mxu0 0
        %1773 = vmatpush1.bf16.msra.mxu0 0
        %1774 = vmatprep.subr.bf16.mxu0 0
        %1775 = vmatpush1.bf16.msra.mxu0 0
        %1776 = vmatprep.subr.bf16.mxu0 0
        %1777 = vmatpush1.bf16.msra.mxu0 0
        %1778 = vmatprep.subr.bf16.mxu0 0
        %1779 = vmatpush1.bf16.msra.mxu0 0
        %1780 = vmatprep.mubr.bf16.mxu0 0
        %1781 = vmatmul.mubr.bf16.gmra.mrb[0].mxu0 %v1540
        %v1782 = vpop.f32.mrb[0].mxu0
        %v1783 = vadd.f32 %v1622, %v1782
        %v1784 = vpop.f32.mrb[0].mxu0
        %v1785 = vpop.f32.mrb[0].mxu0
        %v1786 = vadd.f32 %v1625, %v1785
        %v1787 = vpop.f32.mrb[0].mxu0
        %1788 = vmatprep.mubr.bf16.mxu0 0
        %1789 = vmatmul.mubr.bf16.gmra.mrb[0].mxu0 %v1543
        %v1790 = vpop.f32.mrb[0].mxu0
        %v1791 = vadd.f32 %v1630, %v1790
        %v1792 = vpop.f32.mrb[0].mxu0
        %v1793 = vpop.f32.mrb[0].mxu0
        %v1794 = vadd.f32 %v1633, %v1793
        %v1795 = vpop.f32.mrb[0].mxu0
        %1796 = vmatprep.mubr.bf16.mxu0 0
        %1797 = vmatmul.mubr.bf16.gmra.mrb[0].mxu0 %v1546
        %v1798 = vpop.f32.mrb[0].mxu0
        %v1799 = vadd.f32 %v1638, %v1798
        %v1800 = vpop.f32.mrb[0].mxu0
        %v1801 = vpop.f32.mrb[0].mxu0
        %v1802 = vadd.f32 %v1641, %v1801
        %v1803 = vpop.f32.mrb[0].mxu0
        %1804 = vmatprep.mubr.bf16.mxu0 0
        %1805 = vmatmul.mubr.bf16.gmra.mrb[0].mxu0 %v1549
        %v1806 = vpop.f32.mrb[0].mxu0
        %v1807 = vadd.f32 %v1646, %v1806
        %v1808 = vpop.f32.mrb[0].mxu0
        %v1809 = vpop.f32.mrb[0].mxu0
        %v1810 = vadd.f32 %v1649, %v1809
        %v1811 = vpop.f32.mrb[0].mxu0
        %1812 = vmatprep.mubr.bf16.mxu0 0
        %1813 = vmatmul.mubr.bf16.gmra.mrb[0].mxu0 %v1552
        %v1814 = vpop.f32.mrb[0].mxu0
        %v1815 = vadd.f32 %v1654, %v1814
        %v1816 = vpop.f32.mrb[0].mxu0
        %v1817 = vpop.f32.mrb[0].mxu0
        %v1818 = vadd.f32 %v1657, %v1817
        %v1819 = vpop.f32.mrb[0].mxu0
        %1820 = vmatprep.mubr.bf16.mxu0 0
        %1821 = vmatmul.mubr.bf16.gmra.mrb[0].mxu0 %v1555
        %v1822 = vpop.f32.mrb[0].mxu0
        %v1823 = vadd.f32 %v1662, %v1822
        %v1824 = vpop.f32.mrb[0].mxu0
        %v1825 = vpop.f32.mrb[0].mxu0
        %v1826 = vadd.f32 %v1665, %v1825
        %v1827 = vpop.f32.mrb[0].mxu0
        %1828 = vmatprep.mubr.bf16.mxu0 0
        %1829 = vmatmul.mubr.bf16.gmra.mrb[0].mxu0 %v1558
        %v1830 = vpop.f32.mrb[0].mxu0
        %v1831 = vadd.f32 %v1670, %v1830
        %v1832 = vpop.f32.mrb[0].mxu0
        %v1833 = vpop.f32.mrb[0].mxu0
        %v1834 = vadd.f32 %v1673, %v1833
        %v1835 = vpop.f32.mrb[0].mxu0
        %1836 = vmatprep.mubr.bf16.mxu0 0
        %1837 = vmatmul.mubr.bf16.gmra.mrb[0].mxu0 %v1561
        %v1838 = vpop.f32.mrb[0].mxu0
        %v1839 = vadd.f32 %v1678, %v1838
        %v1840 = vpop.f32.mrb[0].mxu0
        %v1841 = vpop.f32.mrb[0].mxu0
        %v1842 = vadd.f32 %v1681, %v1841
        %v1843 = vpop.f32.mrb[0].mxu0
        %1844 = vmatprep.mubr.bf16.mxu0 0
        %1845 = vmatmul.mubr.bf16.gmra.mrb[0].mxu0 %v1564
        %v1846 = vpop.f32.mrb[0].mxu0
        %v1847 = vadd.f32 %v1686, %v1846
        %v1848 = vpop.f32.mrb[0].mxu0
        %v1849 = vpop.f32.mrb[0].mxu0
        %v1850 = vadd.f32 %v1689, %v1849
        %v1851 = vpop.f32.mrb[0].mxu0
        %1852 = vmatprep.mubr.bf16.mxu0 0
        %1853 = vmatmul.mubr.bf16.gmra.mrb[0].mxu0 %v1567
        %v1854 = vpop.f32.mrb[0].mxu0
        %v1855 = vadd.f32 %v1694, %v1854
        %v1856 = vpop.f32.mrb[0].mxu0
        %v1857 = vpop.f32.mrb[0].mxu0
        %v1858 = vadd.f32 %v1697, %v1857
        %v1859 = vpop.f32.mrb[0].mxu0
        %1860 = vmatprep.mubr.bf16.mxu0 0
        %1861 = vmatmul.mubr.bf16.gmra.mrb[0].mxu0 %v1570
        %v1862 = vpop.f32.mrb[0].mxu0
        %v1863 = vadd.f32 %v1702, %v1862
        %v1864 = vpop.f32.mrb[0].mxu0
        %v1865 = vpop.f32.mrb[0].mxu0
        %v1866 = vadd.f32 %v1705, %v1865
        %v1867 = vpop.f32.mrb[0].mxu0
        %1868 = vmatprep.mubr.bf16.mxu0 0
        %1869 = vmatmul.mubr.bf16.gmra.mrb[0].mxu0 %v1573
        %v1870 = vpop.f32.mrb[0].mxu0
        %v1871 = vadd.f32 %v1710, %v1870
        %v1872 = vpop.f32.mrb[0].mxu0
        %v1873 = vpop.f32.mrb[0].mxu0
        %v1874 = vadd.f32 %v1713, %v1873
        %v1875 = vpop.f32.mrb[0].mxu0
        %1876 = vmatprep.mubr.bf16.mxu0 0
        %1877 = vmatmul.mubr.bf16.gmra.mrb[0].mxu0 %v1576
        %v1878 = vpop.f32.mrb[0].mxu0
        %v1879 = vadd.f32 %v1718, %v1878
        %v1880 = vpop.f32.mrb[0].mxu0
        %v1881 = vpop.f32.mrb[0].mxu0
        %v1882 = vadd.f32 %v1721, %v1881
        %v1883 = vpop.f32.mrb[0].mxu0
        %1884 = vmatprep.mubr.bf16.mxu0 0
        %1885 = vmatmul.mubr.bf16.gmra.mrb[0].mxu0 %v1579
        %v1886 = vpop.f32.mrb[0].mxu0
        %v1887 = vadd.f32 %v1726, %v1886
        %v1888 = vpop.f32.mrb[0].mxu0
        %v1889 = vpop.f32.mrb[0].mxu0
        %v1890 = vadd.f32 %v1729, %v1889
        %v1891 = vpop.f32.mrb[0].mxu0
        %1892 = vmatprep.mubr.bf16.mxu0 0
        %1893 = vmatmul.mubr.bf16.gmra.mrb[0].mxu0 %v1582
        %v1894 = vpop.f32.mrb[0].mxu0
        %v1895 = vadd.f32 %v1734, %v1894
        %v1896 = vpop.f32.mrb[0].mxu0
        %v1897 = vpop.f32.mrb[0].mxu0
        %v1898 = vadd.f32 %v1737, %v1897
        %v1899 = vpop.f32.mrb[0].mxu0
        %1900 = vmatprep.mubr.bf16.mxu0 0
        %1901 = vmatmul.mubr.bf16.gmra.mrb[0].mxu0 %v1585
        %v1902 = vpop.f32.mrb[0].mxu0
        %v1903 = vadd.f32 %v1742, %v1902
        %v1904 = vpop.f32.mrb[0].mxu0
        %v1905 = vpop.f32.mrb[0].mxu0
        %v1906 = vadd.f32 %v1745, %v1905
        %v1907 = vpop.f32.mrb[0].mxu0
        %1908 = vdwg.mxu0
        %v1909 = vld [vmem:[#allocation3] sm:$0xff]
        %v1910 = vld [vmem:[#allocation3 + $0x8] sm:$0xff]
        %v1911 = vld [vmem:[#allocation3 + $0x10] sm:$0xff]
        %v1912 = vld [vmem:[#allocation3 + $0x18] sm:$0xff]
        %v1913 = vld [vmem:[#allocation3 + $0x20] sm:$0xff]
        %v1914 = vld [vmem:[#allocation3 + $0x28] sm:$0xff]
        %v1915 = vld [vmem:[#allocation3 + $0x30] sm:$0xff]
        %v1916 = vld [vmem:[#allocation3 + $0x38] sm:$0xff]
        %v1917 = vld [vmem:[#allocation3 + $0x40] sm:$0xff]
        %v1918 = vld [vmem:[#allocation3 + $0x48] sm:$0xff]
        %v1919 = vld [vmem:[#allocation3 + $0x50] sm:$0xff]
        %v1920 = vld [vmem:[#allocation3 + $0x58] sm:$0xff]
        %v1921 = vld [vmem:[#allocation3 + $0x60] sm:$0xff]
        %v1922 = vld [vmem:[#allocation3 + $0x68] sm:$0xff]
        %v1923 = vld [vmem:[#allocation3 + $0x70] sm:$0xff]
        %v1924 = vld [vmem:[#allocation3 + $0x78] sm:$0xff]
        %v1925 = vld [vmem:[#allocation3 + $0x80] sm:$0xff]
        %v1926 = vld [vmem:[#allocation3 + $0x88] sm:$0xff]
        %v1927 = vld [vmem:[#allocation3 + $0x90] sm:$0xff]
        %v1928 = vld [vmem:[#allocation3 + $0x98] sm:$0xff]
        %v1929 = vld [vmem:[#allocation3 + $0xa0] sm:$0xff]
        %v1930 = vld [vmem:[#allocation3 + $0xa8] sm:$0xff]
        %v1931 = vld [vmem:[#allocation3 + $0xb0] sm:$0xff]
        %v1932 = vld [vmem:[#allocation3 + $0xb8] sm:$0xff]
        %v1933 = vld [vmem:[#allocation3 + $0xc0] sm:$0xff]
        %v1934 = vld [vmem:[#allocation3 + $0xc8] sm:$0xff]
        %v1935 = vld [vmem:[#allocation3 + $0xd0] sm:$0xff]
        %v1936 = vld [vmem:[#allocation3 + $0xd8] sm:$0xff]
        %v1937 = vld [vmem:[#allocation3 + $0xe0] sm:$0xff]
        %v1938 = vld [vmem:[#allocation3 + $0xe8] sm:$0xff]
        %v1939 = vld [vmem:[#allocation3 + $0xf0] sm:$0xff]
        %v1940 = vld [vmem:[#allocation3 + $0xf8] sm:$0xff]
        %v1941 = vadd.f32 %v1783, %v1909
        %v1942 = vadd.f32 %v1786, %v1910
        %v1943 = vadd.f32 %v1791, %v1911
        %v1944 = vadd.f32 %v1794, %v1912
        %v1945 = vadd.f32 %v1799, %v1913
        %v1946 = vadd.f32 %v1802, %v1914
        %v1947 = vadd.f32 %v1807, %v1915
        %v1948 = vadd.f32 %v1810, %v1916
        %v1949 = vadd.f32 %v1815, %v1917
        %v1950 = vadd.f32 %v1818, %v1918
        %v1951 = vadd.f32 %v1823, %v1919
        %v1952 = vadd.f32 %v1826, %v1920
        %v1953 = vadd.f32 %v1831, %v1921
        %v1954 = vadd.f32 %v1834, %v1922
        %v1955 = vadd.f32 %v1839, %v1923
        %v1956 = vadd.f32 %v1842, %v1924
        %v1957 = vadd.f32 %v1847, %v1925
        %v1958 = vadd.f32 %v1850, %v1926
        %v1959 = vadd.f32 %v1855, %v1927
        %v1960 = vadd.f32 %v1858, %v1928
        %v1961 = vadd.f32 %v1863, %v1929
        %v1962 = vadd.f32 %v1866, %v1930
        %v1963 = vadd.f32 %v1871, %v1931
        %v1964 = vadd.f32 %v1874, %v1932
        %v1965 = vadd.f32 %v1879, %v1933
        %v1966 = vadd.f32 %v1882, %v1934
        %v1967 = vadd.f32 %v1887, %v1935
        %v1968 = vadd.f32 %v1890, %v1936
        %v1969 = vadd.f32 %v1895, %v1937
        %v1970 = vadd.f32 %v1898, %v1938
        %v1971 = vadd.f32 %v1903, %v1939
        %v1972 = vadd.f32 %v1906, %v1940
        %v1973 = vld [vmem:[%s252] sm:$0x1]
        %v1975 = vlaneseq
        %v1976 = vshrl.u32 %v1975, 7
        %v1977 = vsub.s32 0, %v1976
        %v1978 = vrot.slane %v1973, %v1977
        %v1980 = vmul.f32 %v1941, %v1978
        %v1981 = vmul.f32 %v1942, %v1978
        %v1982 = vmul.f32 %v1943, %v1978
        %v1983 = vmul.f32 %v1944, %v1978
        %v1984 = vmul.f32 %v1945, %v1978
        %v1985 = vmul.f32 %v1946, %v1978
        %v1986 = vmul.f32 %v1947, %v1978
        %v1987 = vmul.f32 %v1948, %v1978
        %v1988 = vmul.f32 %v1949, %v1978
        %v1989 = vmul.f32 %v1950, %v1978
        %v1990 = vmul.f32 %v1951, %v1978
        %v1991 = vmul.f32 %v1952, %v1978
        %v1992 = vmul.f32 %v1953, %v1978
        %v1993 = vmul.f32 %v1954, %v1978
        %v1994 = vmul.f32 %v1955, %v1978
        %v1995 = vmul.f32 %v1956, %v1978
        %v1996 = vmul.f32 %v1957, %v1978
        %v1997 = vmul.f32 %v1958, %v1978
        %v1998 = vmul.f32 %v1959, %v1978
        %v1999 = vmul.f32 %v1960, %v1978
        %v2000 = vmul.f32 %v1961, %v1978
        %v2001 = vmul.f32 %v1962, %v1978
        %v2002 = vmul.f32 %v1963, %v1978
        %v2003 = vmul.f32 %v1964, %v1978
        %v2004 = vmul.f32 %v1965, %v1978
        %v2005 = vmul.f32 %v1966, %v1978
        %v2006 = vmul.f32 %v1967, %v1978
        %v2007 = vmul.f32 %v1968, %v1978
        %v2008 = vmul.f32 %v1969, %v1978
        %v2009 = vmul.f32 %v1970, %v1978
        %v2010 = vmul.f32 %v1971, %v1978
        %v2011 = vmul.f32 %v1972, %v1978
        %v2012 = vld [vmem:[%s255] sm:$0x1]
        %v2014 = vlaneseq
        %v2015 = vshrl.u32 %v2014, 7
        %v2016 = vsub.s32 0, %v2015
        %v2017 = vrot.slane %v2012, %v2016
        %v2019 = vadd.f32 %v1980, %v2017
        %v2020 = vadd.f32 %v1981, %v2017
        %v2021 = vadd.f32 %v1982, %v2017
        %v2022 = vadd.f32 %v1983, %v2017
        %v2023 = vadd.f32 %v1984, %v2017
        %v2024 = vadd.f32 %v1985, %v2017
        %v2025 = vadd.f32 %v1986, %v2017
        %v2026 = vadd.f32 %v1987, %v2017
        %v2027 = vadd.f32 %v1988, %v2017
        %v2028 = vadd.f32 %v1989, %v2017
        %v2029 = vadd.f32 %v1990, %v2017
        %v2030 = vadd.f32 %v1991, %v2017
        %v2031 = vadd.f32 %v1992, %v2017
        %v2032 = vadd.f32 %v1993, %v2017
        %v2033 = vadd.f32 %v1994, %v2017
        %v2034 = vadd.f32 %v1995, %v2017
        %v2035 = vadd.f32 %v1996, %v2017
        %v2036 = vadd.f32 %v1997, %v2017
        %v2037 = vadd.f32 %v1998, %v2017
        %v2038 = vadd.f32 %v1999, %v2017
        %v2039 = vadd.f32 %v2000, %v2017
        %v2040 = vadd.f32 %v2001, %v2017
        %v2041 = vadd.f32 %v2002, %v2017
        %v2042 = vadd.f32 %v2003, %v2017
        %v2043 = vadd.f32 %v2004, %v2017
        %v2044 = vadd.f32 %v2005, %v2017
        %v2045 = vadd.f32 %v2006, %v2017
        %v2046 = vadd.f32 %v2007, %v2017
        %v2047 = vadd.f32 %v2008, %v2017
        %v2048 = vadd.f32 %v2009, %v2017
        %v2049 = vadd.f32 %v2010, %v2017
        %v2050 = vadd.f32 %v2011, %v2017
        %v2051 = vmax.f32 %v2019, 0.0
        %v2052 = vmax.f32 %v2020, 0.0
        %v2053 = vmax.f32 %v2021, 0.0
        %v2054 = vmax.f32 %v2022, 0.0
        %v2055 = vmax.f32 %v2023, 0.0
        %v2056 = vmax.f32 %v2024, 0.0
        %v2057 = vmax.f32 %v2025, 0.0
        %v2058 = vmax.f32 %v2026, 0.0
        %v2059 = vmax.f32 %v2027, 0.0
        %v2060 = vmax.f32 %v2028, 0.0
        %v2061 = vmax.f32 %v2029, 0.0
        %v2062 = vmax.f32 %v2030, 0.0
        %v2063 = vmax.f32 %v2031, 0.0
        %v2064 = vmax.f32 %v2032, 0.0
        %v2065 = vmax.f32 %v2033, 0.0
        %v2066 = vmax.f32 %v2034, 0.0
        %v2067 = vmax.f32 %v2035, 0.0
        %v2068 = vmax.f32 %v2036, 0.0
        %v2069 = vmax.f32 %v2037, 0.0
        %v2070 = vmax.f32 %v2038, 0.0
        %v2071 = vmax.f32 %v2039, 0.0
        %v2072 = vmax.f32 %v2040, 0.0
        %v2073 = vmax.f32 %v2041, 0.0
        %v2074 = vmax.f32 %v2042, 0.0
        %v2075 = vmax.f32 %v2043, 0.0
        %v2076 = vmax.f32 %v2044, 0.0
        %v2077 = vmax.f32 %v2045, 0.0
        %v2078 = vmax.f32 %v2046, 0.0
        %v2079 = vmax.f32 %v2047, 0.0
        %v2080 = vmax.f32 %v2048, 0.0
        %v2081 = vmax.f32 %v2049, 0.0
        %v2082 = vmax.f32 %v2050, 0.0
        %v2083 = vadd.f32 %v1909, %v607
        %v2084 = vadd.f32 %v1910, %v608
        %v2085 = vadd.f32 %v1911, %v609
        %v2086 = vadd.f32 %v1912, %v610
        %v2087 = vadd.f32 %v1913, %v611
        %v2088 = vadd.f32 %v1914, %v612
        %v2089 = vadd.f32 %v1915, %v613
        %v2090 = vadd.f32 %v1916, %v614
        %v2091 = vadd.f32 %v1917, %v615
        %v2092 = vadd.f32 %v1918, %v616
        %v2093 = vadd.f32 %v1919, %v617
        %v2094 = vadd.f32 %v1920, %v618
        %v2095 = vadd.f32 %v1921, %v619
        %v2096 = vadd.f32 %v1922, %v620
        %v2097 = vadd.f32 %v1923, %v621
        %v2098 = vadd.f32 %v1924, %v622
        %v2099 = vadd.f32 %v1925, %v623
        %v2100 = vadd.f32 %v1926, %v624
        %v2101 = vadd.f32 %v1927, %v625
        %v2102 = vadd.f32 %v1928, %v626
        %v2103 = vadd.f32 %v1929, %v627
        %v2104 = vadd.f32 %v1930, %v628
        %v2105 = vadd.f32 %v1931, %v629
        %v2106 = vadd.f32 %v1932, %v630
        %v2107 = vadd.f32 %v1933, %v631
        %v2108 = vadd.f32 %v1934, %v632
        %v2109 = vadd.f32 %v1935, %v633
        %v2110 = vadd.f32 %v1936, %v634
        %v2111 = vadd.f32 %v1937, %v635
        %v2112 = vadd.f32 %v1938, %v636
        %v2113 = vadd.f32 %v1939, %v637
        %v2114 = vadd.f32 %v1940, %v638
        %2115 = vst.msk [vmem:[#allocation3] sm:$0xff] %vm1136, %v2083
        %2116 = vst.msk [vmem:[#allocation3 + $0x8] sm:$0xff] %vm1136, %v2084
        %2117 = vst.msk [vmem:[#allocation3 + $0x10] sm:$0xff] %vm1136, %v2085
        %2118 = vst.msk [vmem:[#allocation3 + $0x18] sm:$0xff] %vm1136, %v2086
        %2119 = vst.msk [vmem:[#allocation3 + $0x20] sm:$0xff] %vm1136, %v2087
        %2120 = vst.msk [vmem:[#allocation3 + $0x28] sm:$0xff] %vm1136, %v2088
        %2121 = vst.msk [vmem:[#allocation3 + $0x30] sm:$0xff] %vm1136, %v2089
        %2122 = vst.msk [vmem:[#allocation3 + $0x38] sm:$0xff] %vm1136, %v2090
        %2123 = vst.msk [vmem:[#allocation3 + $0x40] sm:$0xff] %vm1136, %v2091
        %2124 = vst.msk [vmem:[#allocation3 + $0x48] sm:$0xff] %vm1136, %v2092
        %2125 = vst.msk [vmem:[#allocation3 + $0x50] sm:$0xff] %vm1136, %v2093
        %2126 = vst.msk [vmem:[#allocation3 + $0x58] sm:$0xff] %vm1136, %v2094
        %2127 = vst.msk [vmem:[#allocation3 + $0x60] sm:$0xff] %vm1136, %v2095
        %2128 = vst.msk [vmem:[#allocation3 + $0x68] sm:$0xff] %vm1136, %v2096
        %2129 = vst.msk [vmem:[#allocation3 + $0x70] sm:$0xff] %vm1136, %v2097
        %2130 = vst.msk [vmem:[#allocation3 + $0x78] sm:$0xff] %vm1136, %v2098
        %2131 = vst.msk [vmem:[#allocation3 + $0x80] sm:$0xff] %vm1136, %v2099
        %2132 = vst.msk [vmem:[#allocation3 + $0x88] sm:$0xff] %vm1136, %v2100
        %2133 = vst.msk [vmem:[#allocation3 + $0x90] sm:$0xff] %vm1136, %v2101
        %2134 = vst.msk [vmem:[#allocation3 + $0x98] sm:$0xff] %vm1136, %v2102
        %2135 = vst.msk [vmem:[#allocation3 + $0xa0] sm:$0xff] %vm1136, %v2103
        %2136 = vst.msk [vmem:[#allocation3 + $0xa8] sm:$0xff] %vm1136, %v2104
        %2137 = vst.msk [vmem:[#allocation3 + $0xb0] sm:$0xff] %vm1136, %v2105
        %2138 = vst.msk [vmem:[#allocation3 + $0xb8] sm:$0xff] %vm1136, %v2106
        %2139 = vst.msk [vmem:[#allocation3 + $0xc0] sm:$0xff] %vm1136, %v2107
        %2140 = vst.msk [vmem:[#allocation3 + $0xc8] sm:$0xff] %vm1136, %v2108
        %2141 = vst.msk [vmem:[#allocation3 + $0xd0] sm:$0xff] %vm1136, %v2109
        %2142 = vst.msk [vmem:[#allocation3 + $0xd8] sm:$0xff] %vm1136, %v2110
        %2143 = vst.msk [vmem:[#allocation3 + $0xe0] sm:$0xff] %vm1136, %v2111
        %2144 = vst.msk [vmem:[#allocation3 + $0xe8] sm:$0xff] %vm1136, %v2112
        %2145 = vst.msk [vmem:[#allocation3 + $0xf0] sm:$0xff] %vm1136, %v2113
        %2146 = vst.msk [vmem:[#allocation3 + $0xf8] sm:$0xff] %vm1136, %v2114
        %2147 = vst.msk [vmem:[%s558 + $0x1] sm:$0xff] %vm1136, %v2051
        %2148 = vst.msk [vmem:[%s558 + $0x9] sm:$0xff] %vm1136, %v2052
        %2149 = vst.msk [vmem:[%s558 + $0x19] sm:$0xff] %vm1136, %v2053
        %2150 = vst.msk [vmem:[%s558 + $0x21] sm:$0xff] %vm1136, %v2054
        %2151 = vst.msk [vmem:[%s558 + $0x31] sm:$0xff] %vm1136, %v2055
        %2152 = vst.msk [vmem:[%s558 + $0x39] sm:$0xff] %vm1136, %v2056
        %2153 = vst.msk [vmem:[%s558 + $0x49] sm:$0xff] %vm1136, %v2057
        %2154 = vst.msk [vmem:[%s558 + $0x51] sm:$0xff] %vm1136, %v2058
        %2155 = vst.msk [vmem:[%s558 + $0x61] sm:$0xff] %vm1136, %v2059
        %2156 = vst.msk [vmem:[%s558 + $0x69] sm:$0xff] %vm1136, %v2060
        %2157 = vst.msk [vmem:[%s558 + $0x79] sm:$0xff] %vm1136, %v2061
        %2158 = vst.msk [vmem:[%s558 + $0x81] sm:$0xff] %vm1136, %v2062
        %2159 = vst.msk [vmem:[%s558 + $0x91] sm:$0xff] %vm1136, %v2063
        %2160 = vst.msk [vmem:[%s558 + $0x99] sm:$0xff] %vm1136, %v2064
        %2161 = vst.msk [vmem:[%s558 + $0xa9] sm:$0xff] %vm1136, %v2065
        %2162 = vst.msk [vmem:[%s558 + $0xb1] sm:$0xff] %vm1136, %v2066
        %2163 = vst.msk [vmem:[%s558 + $0xc1] sm:$0xff] %vm1136, %v2067
        %2164 = vst.msk [vmem:[%s558 + $0xc9] sm:$0xff] %vm1136, %v2068
        %2165 = vst.msk [vmem:[%s558 + $0xd9] sm:$0xff] %vm1136, %v2069
        %2166 = vst.msk [vmem:[%s558 + $0xe1] sm:$0xff] %vm1136, %v2070
        %2167 = vst.msk [vmem:[%s558 + $0xf1] sm:$0xff] %vm1136, %v2071
        %2168 = vst.msk [vmem:[%s558 + $0xf9] sm:$0xff] %vm1136, %v2072
        %2169 = vst.msk [vmem:[%s558 + $0x109] sm:$0xff] %vm1136, %v2073
        %2170 = vst.msk [vmem:[%s558 + $0x111] sm:$0xff] %vm1136, %v2074
        %2171 = vst.msk [vmem:[%s558 + $0x121] sm:$0xff] %vm1136, %v2075
        %2172 = vst.msk [vmem:[%s558 + $0x129] sm:$0xff] %vm1136, %v2076
        %2173 = vst.msk [vmem:[%s558 + $0x139] sm:$0xff] %vm1136, %v2077
        %2174 = vst.msk [vmem:[%s558 + $0x141] sm:$0xff] %vm1136, %v2078
        %2175 = vst.msk [vmem:[%s558 + $0x151] sm:$0xff] %vm1136, %v2079
        %2176 = vst.msk [vmem:[%s558 + $0x159] sm:$0xff] %vm1136, %v2080
        %2177 = vst.msk [vmem:[%s558 + $0x169] sm:$0xff] %vm1136, %v2081
        %2178 = vst.msk [vmem:[%s558 + $0x171] sm:$0xff] %vm1136, %v2082
        %p2179 = scmp.eq.s32.totalorder %s23, 3
        // Predicated region
        $region41: #{single_level_densenet.1} parent=35 // pred_check
          %p2180 = pneg %p2179
        $region42: #{single_level_densenet.1} parent=35 // pred_check_branch
          %2182 = sbr.rel (%p2180) target = $region44
        $region43: #{single_level_densenet.1} parent=35 // pred_region
          %2183 = vst.msk [vmem:[%s239] sm:$0xff] %vm1136, %v2051
          %2184 = vst.msk [vmem:[%s239 + $0x8] sm:$0xff] %vm1136, %v2052
          %2185 = vst.msk [vmem:[%s239 + $0x10] sm:$0xff] %vm1136, %v2053
          %2186 = vst.msk [vmem:[%s239 + $0x18] sm:$0xff] %vm1136, %v2054
          %2187 = vst.msk [vmem:[%s239 + $0x20] sm:$0xff] %vm1136, %v2055
          %2188 = vst.msk [vmem:[%s239 + $0x28] sm:$0xff] %vm1136, %v2056
          %2189 = vst.msk [vmem:[%s239 + $0x30] sm:$0xff] %vm1136, %v2057
          %2190 = vst.msk [vmem:[%s239 + $0x38] sm:$0xff] %vm1136, %v2058
          %2191 = vst.msk [vmem:[%s239 + $0x40] sm:$0xff] %vm1136, %v2059
          %2192 = vst.msk [vmem:[%s239 + $0x48] sm:$0xff] %vm1136, %v2060
          %2193 = vst.msk [vmem:[%s239 + $0x50] sm:$0xff] %vm1136, %v2061
          %2194 = vst.msk [vmem:[%s239 + $0x58] sm:$0xff] %vm1136, %v2062
          %2195 = vst.msk [vmem:[%s239 + $0x60] sm:$0xff] %vm1136, %v2063
          %2196 = vst.msk [vmem:[%s239 + $0x68] sm:$0xff] %vm1136, %v2064
          %2197 = vst.msk [vmem:[%s239 + $0x70] sm:$0xff] %vm1136, %v2065
          %2198 = vst.msk [vmem:[%s239 + $0x78] sm:$0xff] %vm1136, %v2066
          %2199 = vst.msk [vmem:[%s239 + $0x80] sm:$0xff] %vm1136, %v2067
          %2200 = vst.msk [vmem:[%s239 + $0x88] sm:$0xff] %vm1136, %v2068
          %2201 = vst.msk [vmem:[%s239 + $0x90] sm:$0xff] %vm1136, %v2069
          %2202 = vst.msk [vmem:[%s239 + $0x98] sm:$0xff] %vm1136, %v2070
          %2203 = vst.msk [vmem:[%s239 + $0xa0] sm:$0xff] %vm1136, %v2071
          %2204 = vst.msk [vmem:[%s239 + $0xa8] sm:$0xff] %vm1136, %v2072
          %2205 = vst.msk [vmem:[%s239 + $0xb0] sm:$0xff] %vm1136, %v2073
          %2206 = vst.msk [vmem:[%s239 + $0xb8] sm:$0xff] %vm1136, %v2074
          %2207 = vst.msk [vmem:[%s239 + $0xc0] sm:$0xff] %vm1136, %v2075
          %2208 = vst.msk [vmem:[%s239 + $0xc8] sm:$0xff] %vm1136, %v2076
          %2209 = vst.msk [vmem:[%s239 + $0xd0] sm:$0xff] %vm1136, %v2077
          %2210 = vst.msk [vmem:[%s239 + $0xd8] sm:$0xff] %vm1136, %v2078
          %2211 = vst.msk [vmem:[%s239 + $0xe0] sm:$0xff] %vm1136, %v2079
          %2212 = vst.msk [vmem:[%s239 + $0xe8] sm:$0xff] %vm1136, %v2080
          %2213 = vst.msk [vmem:[%s239 + $0xf0] sm:$0xff] %vm1136, %v2081
          %2214 = vst.msk [vmem:[%s239 + $0xf8] sm:$0xff] %vm1136, %v2082
        $region44: #{single_level_densenet.1} parent=35 // pred_fallthru
          _
        %s2215 = sand.u32 %s142, 1
        %s2216 = scalar_lea.sflag [#allocation5], %s2215
        %s2217 = sand.u32 %s142, 1
        %s2218 = smul.addr %s2217, 256
        %s2219 = scalar_lea.vmem [#allocation4], %s2218
        // Predicated region
        $region45: #{single_level_densenet.1} parent=35 // pred_check
          %p2220 = pneg %p152
        $region46: #{single_level_densenet.1} parent=35 // pred_check_branch
          %2222 = sbr.rel (%p2220) target = $region48
        $region47: #{single_level_densenet.1} parent=35 // pred_region
          %s2224 = ssub.s32 4096, 4096
          %2225 = vsyncadd %s2216, %s2224
          %s2226 = smul.addr %s22, 32
          %s2227 = smul.addr %s2226, 128
          %s2228 = scalar_lea.hbm %s4, %s2227
          %s2229 = sshll.u32 %s2219, 4
          %s2230 = int_to_ptr.vmem [resolvable:$true] %s2229
          %2235 = dma.vmem_to_hbm [thread:$0]  %s2230, 4096, %s2228, %s2216, 128, 128, 8
        $region48: #{single_level_densenet.1} parent=35 // pred_fallthru
          _
      $region36: #{single_level_densenet.1} parent=5 // pred_fallthru
        _
      %p2236 = scmp.le.s32.totalorder 2, %s13
      // Predicated region
      $region49: #{single_level_densenet.1} parent=5 // pred_check
        %p2237 = pneg %p2236
      $region50: #{single_level_densenet.1} parent=5 // pred_check_branch
        %2239 = sbr.rel (%p2237) target = $region52
      $region51: #{single_level_densenet.1} parent=5 // pred_region
        %s2240 = ssub.s32 %s13, 2
        // Predicated region
        $region53: #{single_level_densenet.1} parent=51 // pred_check
          %p2241 = pneg %p158
        $region54: #{single_level_densenet.1} parent=51 // pred_check_branch
          %2243 = sbr.rel (%p2241) target = $region56
        $region55: #{single_level_densenet.1} parent=51 // pred_region
          %s2244 = sand.u32 %s143, 1
          %s2245 = scalar_lea.sflag [#allocation5], %s2244
          %s2246 = sand.u32 %s143, 1
          %s2247 = smul.addr %s2246, 256
          %s2248 = scalar_lea.vmem [#allocation4], %s2247
          %2249 = dma.done %s2245, 4096
        $region56: #{single_level_densenet.1} parent=51 // pred_fallthru
          _
      $region52: #{single_level_densenet.1} parent=5 // pred_fallthru
        _
    $region6: #{single_level_densenet.1} parent=1 // loop_footer
      %s17 = sadd.s32 1, %s13
    $region7: #{single_level_densenet.1} parent=1 // loop_footer_branch
      %12 = sbr.rel target = $region3
    $region8: #{single_level_densenet.1} parent=1 // loop_exit
      _
    %2250 = vsyncpa [#allocation5], 1
    %s2251 = scalar_lea.sflag [#allocation5], 1
    %2252 = vsyncpa %s2251, 1

</llo_original>
